<compile_context>
chip_gen: v5e
topology: v5e:2x2
jax: 0.10.0
libtpu: 0.0.40
codegen_flags: <defaults>
</compile_context>

<pallas_src>
import jax
import jax.numpy as jnp
from jax.experimental import pallas as pl
from jax.experimental.pallas import tpu as pltpu


def _round_up(x, m):
    return (x + m - 1) // m * m


def _critic_kernel(state_ref, action_ref,
                   w14_ref, b14_ref,
                   w2_ref, b2_ref, w5_ref, b5_ref,
                   w3r_ref, w6r_ref, b36_ref,
                   out_ref):
    cdt = w14_ref.dtype                    # MXU input dtype (bf16)

    # Merged layer 1 of both heads: one K=(S+A) bf16 matmul against
    # w14 [S+A, 2*fc1_pad].  The concat is an in-kernel lane shuffle, so there
    # is no wrapper-side concat op and only one MXU pass over N = 2*fc1_pad.
    xa = jnp.concatenate([state_ref[...], action_ref[...]], axis=-1).astype(cdt)
    h = jnp.dot(xa, w14_ref[...], preferred_element_type=jnp.float32) + b14_ref[...]
    h = jnp.maximum(h, 0.0)

    fc1 = w2_ref.shape[0]                  # padded fc1 (multiple of 128)
    h1 = h[:, :fc1].astype(cdt)            # head-1 activations (128-aligned split)
    h2 = h[:, fc1:].astype(cdt)            # head-2 activations

    # Layer 2: two well-shaped bf16 MXU matmuls (K=512, N=384), f32 accumulate.
    g1 = jnp.maximum(
        jnp.dot(h1, w2_ref[...], preferred_element_type=jnp.float32) + b2_ref[...], 0.0)
    g2 = jnp.maximum(
        jnp.dot(h2, w5_ref[...], preferred_element_type=jnp.float32) + b5_ref[...], 0.0)

    # Final N=1 layers as VPU multiply + lane (XLU) reduction instead of a
    # 1-wide MXU matmul; scalar biases come from SMEM.
    q1 = jnp.sum(g1 * w3r_ref[...], axis=-1, keepdims=True) + b36_ref[0]
    q2 = jnp.sum(g2 * w6r_ref[...], axis=-1, keepdims=True) + b36_ref[1]

    # One combined store into the [blk, 2] output tile.
    out_ref[...] = jnp.concatenate([q1, q2], axis=-1).astype(out_ref.dtype)


def _choose_block(B, block_b):
    """Batch block: multiple of 8 (sublanes), <= block_b, and for larger batches
    at least 2 grid steps so v7x's two TensorCores both get work."""
    if B <= 16:
        return _round_up(B, 8)
    return min(block_b, _round_up(pl.cdiv(B, 2), 8))


def critic_forward(state, action, params, *, block_b=1024):
    """Twin-Q critic forward pass. Returns (q1, q2), each [batch, 1] float32."""
    B, S = state.shape
    A = action.shape[1]

    blk = _choose_block(B, block_b)
    B_pad = _round_up(B, blk)
    if B_pad != B:                         # ragged tail: zero-pad, slice away below
        state = jnp.pad(state, ((0, B_pad - B), (0, 0)))
        action = jnp.pad(action, ((0, B_pad - B), (0, 0)))
    grid = (B_pad // blk,)

    w14, b14 = params["w14"], params["b14"]
    w2, b2, w5, b5 = params["w2"], params["b2"], params["w5"], params["b5"]
    w3r, w6r, b36 = params["w3r"], params["w6r"], params["b36"]

    batch_map = lambda i: (i, 0)           # tiles the batch dim
    fixed_map = lambda i: (0, 0)           # weights: same whole-array block every step

    in_specs = [
        pl.BlockSpec((blk, S), batch_map),
        pl.BlockSpec((blk, A), batch_map),
        pl.BlockSpec(w14.shape, fixed_map),
        pl.BlockSpec(b14.shape, fixed_map),
        pl.BlockSpec(w2.shape, fixed_map),
        pl.BlockSpec(b2.shape, fixed_map),
        pl.BlockSpec(w5.shape, fixed_map),
        pl.BlockSpec(b5.shape, fixed_map),
        pl.BlockSpec(w3r.shape, fixed_map),
        pl.BlockSpec(w6r.shape, fixed_map),
        pl.BlockSpec(memory_space=pltpu.MemorySpace.SMEM),   # b36 scalars
    ]
    out_spec = pl.BlockSpec((blk, 2), batch_map)

    out = pl.pallas_call(
        _critic_kernel,
        grid=grid,
        out_shape=jax.ShapeDtypeStruct((B_pad, 2), jnp.float32),
        in_specs=in_specs,
        out_specs=out_spec,
        compiler_params=pltpu.CompilerParams(
            dimension_semantics=("parallel",),
            vmem_limit_bytes=40 * 1024 * 1024),   # ~18 MiB live at blk=1024; headroom
    )(state, action, w14, b14, w2, b2, w5, b5, w3r, w6r, b36)

    return out[:B, 0:1], out[:B, 1:2]


def pack_critic_params(w1, b1, w2, b2, w3, b3, w4, b4, w5, b5, w6, b6,
                       state_size, action_size,
                       fc1_pad=512, fc2_pad=384, matmul_dtype=jnp.bfloat16):
    """Pack logical [in, out] weights / [1, out] biases into the fused,
    lane-padded layout the kernel expects. (PyTorch nn.Linear weights are
    [out, in]; transpose them before calling this.)"""
    in_dim, fc1 = w1.shape
    fc2 = w2.shape[1]
    assert in_dim == state_size + action_size
    assert fc1_pad >= fc1 and fc1_pad % 128 == 0
    assert fc2_pad >= fc2 and fc2_pad % 128 == 0

    def pad2(x, rows, cols):
        return jnp.pad(x, ((0, rows - x.shape[0]), (0, cols - x.shape[1])))

    # Both heads' first layers fused along the output axis: [in_dim, 2*fc1_pad],
    # stored bf16 so layer 1 is a single one-pass MXU matmul.
    w14 = jnp.concatenate([pad2(w1, in_dim, fc1_pad), pad2(w4, in_dim, fc1_pad)],
                          axis=1).astype(matmul_dtype)
    b14 = jnp.concatenate([pad2(b1, 1, fc1_pad), pad2(b4, 1, fc1_pad)],
                          axis=1).astype(jnp.float32)

    return dict(
        w14=w14,
        b14=b14,
        w2=pad2(w2, fc1_pad, fc2_pad).astype(matmul_dtype),
        b2=pad2(b2, 1, fc2_pad).astype(jnp.float32),
        w5=pad2(w5, fc1_pad, fc2_pad).astype(matmul_dtype),
        b5=pad2(b5, 1, fc2_pad).astype(jnp.float32),
        w3r=pad2(w3.T, 1, fc2_pad).astype(jnp.float32),   # final layers as row vectors
        w6r=pad2(w6.T, 1, fc2_pad).astype(jnp.float32),
        b36=jnp.stack([b3[0, 0], b6[0, 0]]).astype(jnp.float32),  # SMEM scalars
    )


def init_critic_params(key, state_size, action_size,
                       fc1_units=400, fc2_units=300, **pack_kwargs):
    """PyTorch nn.Linear default init: U(-1/sqrt(fan_in), 1/sqrt(fan_in)) with the
    *logical* fan_in, then packed/padded into the kernel layout."""
    in_dim = state_size + action_size

    def linear(k, fan_in, fan_out):
        kw, kb = jax.random.split(k)
        bound = 1.0 / float(fan_in) ** 0.5
        w = jax.random.uniform(kw, (fan_in, fan_out), jnp.float32, -bound, bound)
        b = jax.random.uniform(kb, (1, fan_out), jnp.float32, -bound, bound)
        return w, b

    ks = jax.random.split(key, 6)
    w1, b1 = linear(ks[0], in_dim, fc1_units)
    w2, b2 = linear(ks[1], fc1_units, fc2_units)
    w3, b3 = linear(ks[2], fc2_units, 1)
    w4, b4 = linear(ks[3], in_dim, fc1_units)
    w5, b5 = linear(ks[4], fc1_units, fc2_units)
    w6, b6 = linear(ks[5], fc1_units and fc2_units, 1)
    logical = (w1, b1, w2, b2, w3, b3, w4, b4, w5, b5, w6, b6)
    packed = pack_critic_params(*logical, state_size, action_size, **pack_kwargs)
    return packed, logical


def _kernel_math_reference(state, action, params):
    """Pure-JAX mirror of the kernel math (padded params, bf16 MXU inputs,
    f32 accumulation)."""
    cdt = params["w14"].dtype
    xa = jnp.concatenate([state, action], axis=1).astype(cdt)
    h = jnp.maximum(jnp.dot(xa, params["w14"],
                            preferred_element_type=jnp.float32) + params["b14"], 0.0)
    fc1p = params["w2"].shape[0]
    g1 = jnp.maximum(jnp.dot(h[:, :fc1p].astype(cdt), params["w2"],
                             preferred_element_type=jnp.float32) + params["b2"], 0.0)
    g2 = jnp.maximum(jnp.dot(h[:, fc1p:].astype(cdt), params["w5"],
                             preferred_element_type=jnp.float32) + params["b5"], 0.0)
    r1 = jnp.sum(g1 * params["w3r"], axis=-1, keepdims=True) + params["b36"][0]
    r2 = jnp.sum(g2 * params["w6r"], axis=-1, keepdims=True) + params["b36"][1]
    return r1, r2


if __name__ == "__main__":
    batch, state_size, action_size = 2, 8, 4

    key = jax.random.PRNGKey(0)
    k_state, k_action, k_params = jax.random.split(key, 3)
    state = jax.random.normal(k_state, (batch, state_size), jnp.float32)
    action = jax.random.normal(k_action, (batch, action_size), jnp.float32)
    params, logical = init_critic_params(k_params, state_size, action_size)

    fwd = jax.jit(critic_forward)
    q1, q2 = fwd(state, action, params)
    jax.block_until_ready((q1, q2))
    assert q1.shape == (batch, 1) and q2.shape == (batch, 1)

    # Reference 1: mirrors the kernel math exactly (padded params, bf16 MXU
    # inputs, f32 accumulation).
    r1, r2 = _kernel_math_reference(state, action, params)
    assert jnp.allclose(q1, r1, atol=5e-3, rtol=5e-3)
    assert jnp.allclose(q2, r2, atol=5e-3, rtol=5e-3)

    # Reference 2: the original unfused / unpadded f32 module math (looser
    # tolerance only because the kernel feeds the MXU bf16 inputs).
    w1, b1, w2, b2, w3, b3, w4, b4, w5, b5, w6, b6 = logical
    xa = jnp.concatenate([state, action], axis=1)
    f1 = jnp.maximum(xa @ w1 + b1, 0.0)
    f1 = jnp.maximum(f1 @ w2 + b2, 0.0)
    f1 = f1 @ w3 + b3
    f2 = jnp.maximum(xa @ w4 + b4, 0.0)
    f2 = jnp.maximum(f2 @ w5 + b5, 0.0)
    f2 = f2 @ w6 + b6
    assert jnp.allclose(q1, f1, atol=5e-2, rtol=5e-2)
    assert jnp.allclose(q2, f2, atol=5e-2, rtol=5e-2)

    # Extra check: a ragged batch exercises the cdiv grid + zero-padded tail
    # path (blk=16, 2 grid steps, 12 padded rows sliced away).
    b2_batch = 20
    k_s2, k_a2 = jax.random.split(jax.random.PRNGKey(1))
    state2 = jax.random.normal(k_s2, (b2_batch, state_size), jnp.float32)
    action2 = jax.random.normal(k_a2, (b2_batch, action_size), jnp.float32)
    p1, p2 = jax.jit(critic_forward)(state2, action2, params)
    jax.block_until_ready((p1, p2))
    s1, s2 = _kernel_math_reference(state2, action2, params)
    assert p1.shape == (b2_batch, 1) and p2.shape == (b2_batch, 1)
    assert jnp.allclose(p1, s1, atol=5e-3, rtol=5e-3)
    assert jnp.allclose(p2, s2, atol=5e-3, rtol=5e-3)

    print("KERNEL_OK")
</pallas_src>

<mosaic_0001>
module attributes {stable_mosaic.version = 11 : i64} {
  func.func @_critic_kernel(%arg0: i32, %arg1: memref<8x8xf32, #tpu.memory_space<vmem>>, %arg2: memref<8x4xf32, #tpu.memory_space<vmem>>, %arg3: memref<12x1024xbf16, #tpu.memory_space<vmem>>, %arg4: memref<1x1024xf32, #tpu.memory_space<vmem>>, %arg5: memref<512x384xbf16, #tpu.memory_space<vmem>>, %arg6: memref<1x384xf32, #tpu.memory_space<vmem>>, %arg7: memref<512x384xbf16, #tpu.memory_space<vmem>>, %arg8: memref<1x384xf32, #tpu.memory_space<vmem>>, %arg9: memref<1x384xf32, #tpu.memory_space<vmem>>, %arg10: memref<1x384xf32, #tpu.memory_space<vmem>>, %arg11: memref<2xf32, #tpu.memory_space<smem>>, %arg12: memref<8x2xf32, #tpu.memory_space<vmem>>) attributes {dimension_semantics = [#tpu.dimension_semantics<parallel>], iteration_bounds = array<i64: 1>, scalar_prefetch = 0 : i64, scratch_operands = 0 : i64, tpu.core_type = #tpu.core_type<tc>, window_params = [{transform_indices = @transform_0, window_bounds = array<i64: 8, 8>}, {transform_indices = @transform_1, window_bounds = array<i64: 8, 4>}, {pipeline_mode = #tpu.pipeline_mode<synchronous>, transform_indices = @transform_2, window_bounds = array<i64: 12, 1024>}, {pipeline_mode = #tpu.pipeline_mode<synchronous>, transform_indices = @transform_3, window_bounds = array<i64: 1, 1024>}, {pipeline_mode = #tpu.pipeline_mode<synchronous>, transform_indices = @transform_4, window_bounds = array<i64: 512, 384>}, {pipeline_mode = #tpu.pipeline_mode<synchronous>, transform_indices = @transform_5, window_bounds = array<i64: 1, 384>}, {pipeline_mode = #tpu.pipeline_mode<synchronous>, transform_indices = @transform_6, window_bounds = array<i64: 512, 384>}, {pipeline_mode = #tpu.pipeline_mode<synchronous>, transform_indices = @transform_7, window_bounds = array<i64: 1, 384>}, {pipeline_mode = #tpu.pipeline_mode<synchronous>, transform_indices = @transform_8, window_bounds = array<i64: 1, 384>}, {pipeline_mode = #tpu.pipeline_mode<synchronous>, transform_indices = @transform_9, window_bounds = array<i64: 1, 384>}, {transform_indices = @transform_10, window_bounds = array<i64: 2>}, {transform_indices = @transform_11, window_bounds = array<i64: 8, 2>}]} {
    %c0 = arith.constant 0 : index
    %c0_0 = arith.constant 0 : index
    %0 = vector.load %arg1[%c0, %c0_0] : memref<8x8xf32, #tpu.memory_space<vmem>>, vector<8x8xf32>
    %c0_1 = arith.constant 0 : index
    %c0_2 = arith.constant 0 : index
    %1 = vector.load %arg2[%c0_1, %c0_2] : memref<8x4xf32, #tpu.memory_space<vmem>>, vector<8x4xf32>
    %2 = tpu.concatenate %0, %1 in 1 : vector<8x8xf32>, vector<8x4xf32> -> vector<8x12xf32>
    %3 = arith.truncf %2 : vector<8x12xf32> to vector<8x12xbf16>
    %c0_3 = arith.constant 0 : index
    %c0_4 = arith.constant 0 : index
    %4 = vector.load %arg3[%c0_3, %c0_4] : memref<12x1024xbf16, #tpu.memory_space<vmem>>, vector<12x1024xbf16>
    %cst = arith.constant dense<0.000000e+00> : vector<8x1024xf32>
    %5 = tpu.matmul %3, %4, %cst {dimension_numbers = #tpu.dot_dimension_numbers<[1], [0], [0], [1], [0, 0, 1, 1], [], []>} : vector<8x12xbf16>, vector<12x1024xbf16>, vector<8x1024xf32> -> vector<8x1024xf32>
    %c0_5 = arith.constant 0 : index
    %c0_6 = arith.constant 0 : index
    %6 = vector.load %arg4[%c0_5, %c0_6] : memref<1x1024xf32, #tpu.memory_space<vmem>>, vector<1x1024xf32>
    %7 = vector.broadcast %6 : vector<1x1024xf32> to vector<8x1024xf32>
    %8 = arith.addf %5, %7 : vector<8x1024xf32>
    %cst_7 = arith.constant 0.000000e+00 : f32
    %9 = vector.broadcast %cst_7 : f32 to vector<8x1024xf32>
    %10 = arith.maximumf %8, %9 : vector<8x1024xf32>
    %11 = vector.extract_strided_slice %10 {offsets = [0, 0], sizes = [8, 512], strides = [1, 1]} : vector<8x1024xf32> to vector<8x512xf32>
    %12 = arith.truncf %11 : vector<8x512xf32> to vector<8x512xbf16>
    %13 = vector.extract_strided_slice %10 {offsets = [0, 512], sizes = [8, 512], strides = [1, 1]} : vector<8x1024xf32> to vector<8x512xf32>
    %14 = arith.truncf %13 : vector<8x512xf32> to vector<8x512xbf16>
    %c0_8 = arith.constant 0 : index
    %c0_9 = arith.constant 0 : index
    %15 = vector.load %arg5[%c0_8, %c0_9] : memref<512x384xbf16, #tpu.memory_space<vmem>>, vector<512x384xbf16>
    %cst_10 = arith.constant dense<0.000000e+00> : vector<8x384xf32>
    %16 = tpu.matmul %12, %15, %cst_10 {dimension_numbers = #tpu.dot_dimension_numbers<[1], [0], [0], [1], [0, 0, 1, 1], [], []>} : vector<8x512xbf16>, vector<512x384xbf16>, vector<8x384xf32> -> vector<8x384xf32>
    %c0_11 = arith.constant 0 : index
    %c0_12 = arith.constant 0 : index
    %17 = vector.load %arg6[%c0_11, %c0_12] : memref<1x384xf32, #tpu.memory_space<vmem>>, vector<1x384xf32>
    %18 = vector.broadcast %17 : vector<1x384xf32> to vector<8x384xf32>
    %19 = arith.addf %16, %18 : vector<8x384xf32>
    %cst_13 = arith.constant 0.000000e+00 : f32
    %20 = vector.broadcast %cst_13 : f32 to vector<8x384xf32>
    %21 = arith.maximumf %19, %20 : vector<8x384xf32>
    %c0_14 = arith.constant 0 : index
    %c0_15 = arith.constant 0 : index
    %22 = vector.load %arg7[%c0_14, %c0_15] : memref<512x384xbf16, #tpu.memory_space<vmem>>, vector<512x384xbf16>
    %cst_16 = arith.constant dense<0.000000e+00> : vector<8x384xf32>
    %23 = tpu.matmul %14, %22, %cst_16 {dimension_numbers = #tpu.dot_dimension_numbers<[1], [0], [0], [1], [0, 0, 1, 1], [], []>} : vector<8x512xbf16>, vector<512x384xbf16>, vector<8x384xf32> -> vector<8x384xf32>
    %c0_17 = arith.constant 0 : index
    %c0_18 = arith.constant 0 : index
    %24 = vector.load %arg8[%c0_17, %c0_18] : memref<1x384xf32, #tpu.memory_space<vmem>>, vector<1x384xf32>
    %25 = vector.broadcast %24 : vector<1x384xf32> to vector<8x384xf32>
    %26 = arith.addf %23, %25 : vector<8x384xf32>
    %cst_19 = arith.constant 0.000000e+00 : f32
    %27 = vector.broadcast %cst_19 : f32 to vector<8x384xf32>
    %28 = arith.maximumf %26, %27 : vector<8x384xf32>
    %c0_20 = arith.constant 0 : index
    %c0_21 = arith.constant 0 : index
    %29 = vector.load %arg9[%c0_20, %c0_21] : memref<1x384xf32, #tpu.memory_space<vmem>>, vector<1x384xf32>
    %30 = vector.broadcast %29 : vector<1x384xf32> to vector<8x384xf32>
    %31 = arith.mulf %21, %30 : vector<8x384xf32>
    %cst_22 = arith.constant dense<0.000000e+00> : vector<8xf32>
    %32 = vector.multi_reduction <add>, %31, %cst_22 [1] : vector<8x384xf32> to vector<8xf32>
    %33 = vector.shape_cast %32 : vector<8xf32> to vector<8x1xf32>
    %c0_23 = arith.constant 0 : index
    %34 = memref.load %arg11[%c0_23] : memref<2xf32, #tpu.memory_space<smem>>
    %35 = vector.broadcast %34 : f32 to vector<8x1xf32>
    %36 = arith.addf %33, %35 : vector<8x1xf32>
    %c0_24 = arith.constant 0 : index
    %c0_25 = arith.constant 0 : index
    %37 = vector.load %arg10[%c0_24, %c0_25] : memref<1x384xf32, #tpu.memory_space<vmem>>, vector<1x384xf32>
    %38 = vector.broadcast %37 : vector<1x384xf32> to vector<8x384xf32>
    %39 = arith.mulf %28, %38 : vector<8x384xf32>
    %cst_26 = arith.constant dense<0.000000e+00> : vector<8xf32>
    %40 = vector.multi_reduction <add>, %39, %cst_26 [1] : vector<8x384xf32> to vector<8xf32>
    %41 = vector.shape_cast %40 : vector<8xf32> to vector<8x1xf32>
    %c1 = arith.constant 1 : index
    %42 = memref.load %arg11[%c1] : memref<2xf32, #tpu.memory_space<smem>>
    %43 = vector.broadcast %42 : f32 to vector<8x1xf32>
    %44 = arith.addf %41, %43 : vector<8x1xf32>
    %45 = tpu.concatenate %36, %44 in 1 : vector<8x1xf32>, vector<8x1xf32> -> vector<8x2xf32>
    %c0_27 = arith.constant 0 : index
    %c0_28 = arith.constant 0 : index
    %46 = vector.load %arg12[%c0_27, %c0_28] : memref<8x2xf32, #tpu.memory_space<vmem>>, vector<8x2xf32>
    tpu.vector_store %arg12[%c0_27, %c0_28], %45 {strides = array<i32>} : memref<8x2xf32, #tpu.memory_space<vmem>>, vector<8x2xf32>,
    return
  }
  func.func @transform_0(%arg0: i32) -> (i32, i32) {
    %c0_i32 = arith.constant 0 : i32
    %c0_i32_0 = arith.constant 0 : i32
    return %arg0, %c0_i32 : i32, i32
  }
  func.func @transform_1(%arg0: i32) -> (i32, i32) {
    %c0_i32 = arith.constant 0 : i32
    %c0_i32_0 = arith.constant 0 : i32
    return %arg0, %c0_i32 : i32, i32
  }
  func.func @transform_2(%arg0: i32) -> (i32, i32) {
    %c0_i32 = arith.constant 0 : i32
    %c0_i32_0 = arith.constant 0 : i32
    %c0_i32_1 = arith.constant 0 : i32
    return %c0_i32, %c0_i32_0 : i32, i32
  }
  func.func @transform_3(%arg0: i32) -> (i32, i32) {
    %c0_i32 = arith.constant 0 : i32
    %c0_i32_0 = arith.constant 0 : i32
    %c0_i32_1 = arith.constant 0 : i32
    return %c0_i32, %c0_i32_0 : i32, i32
  }
  func.func @transform_4(%arg0: i32) -> (i32, i32) {
    %c0_i32 = arith.constant 0 : i32
    %c0_i32_0 = arith.constant 0 : i32
    %c0_i32_1 = arith.constant 0 : i32
    return %c0_i32, %c0_i32_0 : i32, i32
  }
  func.func @transform_5(%arg0: i32) -> (i32, i32) {
    %c0_i32 = arith.constant 0 : i32
    %c0_i32_0 = arith.constant 0 : i32
    %c0_i32_1 = arith.constant 0 : i32
    return %c0_i32, %c0_i32_0 : i32, i32
  }
  func.func @transform_6(%arg0: i32) -> (i32, i32) {
    %c0_i32 = arith.constant 0 : i32
    %c0_i32_0 = arith.constant 0 : i32
    %c0_i32_1 = arith.constant 0 : i32
    return %c0_i32, %c0_i32_0 : i32, i32
  }
  func.func @transform_7(%arg0: i32) -> (i32, i32) {
    %c0_i32 = arith.constant 0 : i32
    %c0_i32_0 = arith.constant 0 : i32
    %c0_i32_1 = arith.constant 0 : i32
    return %c0_i32, %c0_i32_0 : i32, i32
  }
  func.func @transform_8(%arg0: i32) -> (i32, i32) {
    %c0_i32 = arith.constant 0 : i32
    %c0_i32_0 = arith.constant 0 : i32
    %c0_i32_1 = arith.constant 0 : i32
    return %c0_i32, %c0_i32_0 : i32, i32
  }
  func.func @transform_9(%arg0: i32) -> (i32, i32) {
    %c0_i32 = arith.constant 0 : i32
    %c0_i32_0 = arith.constant 0 : i32
    %c0_i32_1 = arith.constant 0 : i32
    return %c0_i32, %c0_i32_0 : i32, i32
  }
  func.func @transform_10(%arg0: i32) -> i32 {
    %c0_i32 = arith.constant 0 : i32
    %c0_i32_0 = arith.constant 0 : i32
    return %c0_i32 : i32
  }
  func.func @transform_11(%arg0: i32) -> (i32, i32) {
    %c0_i32 = arith.constant 0 : i32
    %c0_i32_0 = arith.constant 0 : i32
    return %arg0, %c0_i32 : i32, i32
  }
}

</mosaic_0001>

<llo_original>
// kernel: critic_forward.1
$region0: #{critic_forward.1}
  #allocation0 [shape = 'u32[]', space=smem, size = 0x4, offset = 0x4, fixed_abs, tag = 'smem constant byte address 0x4 - core index']
  #allocation1 [shape = 'u32[72,128]{1,0:T(1,128)}', space=vmem, size = 0x9000, scoped, tag = 'internal scratch']
  %s0 = inlined_call_operand.vmem [shape: f32[8,8], index: 0, kind: input, shape index: {}]
  %s1 = inlined_call_operand.vmem [shape: f32[8,4], index: 1, kind: input, shape index: {}]
  %s2 = inlined_call_operand.hbm [shape: bf16[12,1024], index: 2, kind: input, shape index: {}]
  %s3 = inlined_call_operand.vmem [shape: f32[1,1024], index: 3, kind: input, shape index: {}]
  %s4 = inlined_call_operand.hbm [shape: bf16[512,384], index: 4, kind: input, shape index: {}]
  %s5 = inlined_call_operand.vmem [shape: f32[1,384], index: 5, kind: input, shape index: {}]
  %s6 = inlined_call_operand.hbm [shape: bf16[512,384], index: 6, kind: input, shape index: {}]
  %s7 = inlined_call_operand.vmem [shape: f32[1,384], index: 7, kind: input, shape index: {}]
  %s8 = inlined_call_operand.vmem [shape: f32[1,384], index: 8, kind: input, shape index: {}]
  %s9 = inlined_call_operand.vmem [shape: f32[1,384], index: 9, kind: input, shape index: {}]
  %s10 = inlined_call_operand.vmem [shape: f32[2], index: 10, kind: input, shape index: {}]
  %s11 = inlined_call_operand.vmem [shape: f32[8,2], index: 11, kind: output, shape index: {}]
  %s12 = sld [smem:[#allocation0]]
  $region70: #{critic_forward.1} parent=0
    _
  %s14 = ssub.s32 1, %s12
  %s15 = scalar_select 0, %s14, %s12
  $region1: #{critic_forward.1} parent=0
    #allocation2 [shape = 'u8[32768]{0}', space=vmem, size = 0x8000, scoped, tag = 'input window, operand 2, single buffered']
    #allocation3 [shape = 's32[1]{0}', space=sflag, size = 0x4, scoped, tag = 'scoped memory for critic_forward.1']
    #allocation4 [shape = 's32[1]{0}', space=sflag, size = 0x4, scoped, tag = 'scoped memory for critic_forward.1']
    #allocation5 [shape = 'u8[393216]{0}', space=vmem, size = 0x60000, scoped, tag = 'input window, operand 4, single buffered']
    #allocation6 [shape = 's32[1]{0}', space=sflag, size = 0x4, scoped, tag = 'scoped memory for critic_forward.1']
    #allocation7 [shape = 'u8[393216]{0}', space=vmem, size = 0x60000, scoped, tag = 'input window, operand 6, single buffered']
    #allocation8 [shape = 'u8[512]{0}', space=smem, size = 0x200, scoped, tag = 'input window, operand 10, single buffered']
    %16 = vsyncpa [#allocation3], 0
    %17 = vsyncpa [#allocation6], 0
    %18 = vsyncpa [#allocation4], 0
    // Predicated region
    $region2: #{critic_forward.1} parent=1 // pred_check
      _
    $region3: #{critic_forward.1} parent=1 // pred_check_branch
      %20 = sbr.rel (0) target = $region5
    $region4: #{critic_forward.1} parent=1 // pred_region
      _
    $region5: #{critic_forward.1} parent=1 // pred_fallthru
      _
    // Predicated region
    $region6: #{critic_forward.1} parent=1 // pred_check
      _
    $region7: #{critic_forward.1} parent=1 // pred_check_branch
      %22 = sbr.rel (0) target = $region9
    $region8: #{critic_forward.1} parent=1 // pred_region
      _
    $region9: #{critic_forward.1} parent=1 // pred_fallthru
      _
    // Predicated region
    $region10: #{critic_forward.1} parent=1 // pred_check
      _
    $region11: #{critic_forward.1} parent=1 // pred_check_branch
      %24 = sbr.rel (0) target = $region13
    $region12: #{critic_forward.1} parent=1 // pred_region
      %26 = vsyncadd [#allocation3], 0
      %s27 = sshll.u32 %s2, 4
      %s28 = int_to_ptr.hbm [resolvable:$true] %s27
      %s29 = sshll.u32 [#allocation2], 4
      %s30 = int_to_ptr.vmem [resolvable:$true] %s29
      %35 = dma.hbm_to_vmem [thread:$0]  %s28, 1024, %s30, [#allocation3], 512, 512, 32
    $region13: #{critic_forward.1} parent=1 // pred_fallthru
      _
    // Predicated region
    $region14: #{critic_forward.1} parent=1 // pred_check
      _
    $region15: #{critic_forward.1} parent=1 // pred_check_branch
      %37 = sbr.rel (0) target = $region17
    $region16: #{critic_forward.1} parent=1 // pred_region
      _
    $region17: #{critic_forward.1} parent=1 // pred_fallthru
      _
    // Predicated region
    $region18: #{critic_forward.1} parent=1 // pred_check
      _
    $region19: #{critic_forward.1} parent=1 // pred_check_branch
      %39 = sbr.rel (0) target = $region21
    $region20: #{critic_forward.1} parent=1 // pred_region
      %41 = vsyncadd [#allocation6], 0
      %s42 = sshll.u32 %s4, 4
      %s43 = int_to_ptr.hbm [resolvable:$true] %s42
      %s44 = sshll.u32 [#allocation5], 4
      %s45 = int_to_ptr.vmem [resolvable:$true] %s44
      %50 = dma.hbm_to_vmem [thread:$0]  %s43, 12288, %s45, [#allocation6], 192, 192, 12
    $region21: #{critic_forward.1} parent=1 // pred_fallthru
      _
    // Predicated region
    $region22: #{critic_forward.1} parent=1 // pred_check
      _
    $region23: #{critic_forward.1} parent=1 // pred_check_branch
      %52 = sbr.rel (0) target = $region25
    $region24: #{critic_forward.1} parent=1 // pred_region
      _
    $region25: #{critic_forward.1} parent=1 // pred_fallthru
      _
    // Predicated region
    $region26: #{critic_forward.1} parent=1 // pred_check
      _
    $region27: #{critic_forward.1} parent=1 // pred_check_branch
      %54 = sbr.rel (0) target = $region29
    $region28: #{critic_forward.1} parent=1 // pred_region
      %56 = vsyncadd [#allocation6], 0
      %s57 = sshll.u32 %s6, 4
      %s58 = int_to_ptr.hbm [resolvable:$true] %s57
      %s59 = sshll.u32 [#allocation7], 4
      %s60 = int_to_ptr.vmem [resolvable:$true] %s59
      %65 = dma.hbm_to_vmem [thread:$0]  %s58, 12288, %s60, [#allocation6], 192, 192, 12
    $region29: #{critic_forward.1} parent=1 // pred_fallthru
      _
    // Predicated region
    $region30: #{critic_forward.1} parent=1 // pred_check
      _
    $region31: #{critic_forward.1} parent=1 // pred_check_branch
      %67 = sbr.rel (0) target = $region33
    $region32: #{critic_forward.1} parent=1 // pred_region
      _
    $region33: #{critic_forward.1} parent=1 // pred_fallthru
      _
    // Predicated region
    $region34: #{critic_forward.1} parent=1 // pred_check
      _
    $region35: #{critic_forward.1} parent=1 // pred_check_branch
      %69 = sbr.rel (0) target = $region37
    $region36: #{critic_forward.1} parent=1 // pred_region
      _
    $region37: #{critic_forward.1} parent=1 // pred_fallthru
      _
    // Predicated region
    $region38: #{critic_forward.1} parent=1 // pred_check
      _
    $region39: #{critic_forward.1} parent=1 // pred_check_branch
      %71 = sbr.rel (0) target = $region41
    $region40: #{critic_forward.1} parent=1 // pred_region
      _
    $region41: #{critic_forward.1} parent=1 // pred_fallthru
      _
    // Predicated region
    $region42: #{critic_forward.1} parent=1 // pred_check
      _
    $region43: #{critic_forward.1} parent=1 // pred_check_branch
      %73 = sbr.rel (0) target = $region45
    $region44: #{critic_forward.1} parent=1 // pred_region
      %75 = vsyncadd [#allocation4], 0
      %s77 = sshll.u32 %s10, 4
      %s78 = int_to_ptr.vmem [resolvable:$true] %s77
      %80 = dma.vmem_to_smem %s78, 16, [#allocation8], [#allocation4]
    $region45: #{critic_forward.1} parent=1 // pred_fallthru
      _
    // Predicated region
    $region46: #{critic_forward.1} parent=1 // pred_check
      _
    $region47: #{critic_forward.1} parent=1 // pred_check_branch
      %82 = sbr.rel (0) target = $region49
    $region48: #{critic_forward.1} parent=1 // pred_region
      %84 = dma.done [#allocation3], 1024
    $region49: #{critic_forward.1} parent=1 // pred_fallthru
      _
    // Predicated region
    $region50: #{critic_forward.1} parent=1 // pred_check
      _
    $region51: #{critic_forward.1} parent=1 // pred_check_branch
      %86 = sbr.rel (0) target = $region53
    $region52: #{critic_forward.1} parent=1 // pred_region
      %88 = dma.done [#allocation6], 12288
    $region53: #{critic_forward.1} parent=1 // pred_fallthru
      _
    // Predicated region
    $region54: #{critic_forward.1} parent=1 // pred_check
      _
    $region55: #{critic_forward.1} parent=1 // pred_check_branch
      %90 = sbr.rel (0) target = $region57
    $region56: #{critic_forward.1} parent=1 // pred_region
      %92 = dma.done [#allocation6], 12288
    $region57: #{critic_forward.1} parent=1 // pred_fallthru
      _
    // Predicated region
    $region58: #{critic_forward.1} parent=1 // pred_check
      _
    $region59: #{critic_forward.1} parent=1 // pred_check_branch
      %94 = sbr.rel (0) target = $region61
    $region60: #{critic_forward.1} parent=1 // pred_region
      %96 = dma.done [#allocation4], 16
    $region61: #{critic_forward.1} parent=1 // pred_fallthru
      _
    %97 = sfence
    %v99 = vld [vmem:[%s0] sm:$0xff]
    %v100 = vld [vmem:[%s1] sm:$0xff]
    %102 = vrot.lane.b32.xlu0 %v100, 8
    %v103 = vpop.permute.xlu0 %102
    %vm105 = vcmask 64512
    %v106 = vsel %vm105, %v99, %v103
    %v107 = vpack.c.bf16 %v106, %v106
    %v108 = vld [vmem:[#allocation2] sm:$0xff]
    %v109 = vld [vmem:[#allocation2 + $0x8] sm:$0xff]
    %v110 = vld [vmem:[#allocation2 + $0x10] sm:$0xff]
    %v111 = vld [vmem:[#allocation2 + $0x18] sm:$0xff]
    %v112 = vld [vmem:[#allocation2 + $0x20] sm:$0x33]
    %v113 = vld [vmem:[#allocation2 + $0x28] sm:$0x33]
    %v114 = vld [vmem:[#allocation2 + $0x30] sm:$0x33]
    %v115 = vld [vmem:[#allocation2 + $0x38] sm:$0x33]
    %v116 = vld [vmem:[%s3] sm:$0xff]
    %v118 = vperm.slane %v116, 0
    %v119 = vperm.slane %v116, 1
    %v120 = vperm.slane %v116, 2
    %v121 = vperm.slane %v116, 3
    %v122 = vperm.slane %v116, 4
    %v123 = vperm.slane %v116, 5
    %v124 = vperm.slane %v116, 6
    %v125 = vperm.slane %v116, 7
    %v142 = vunpack.c.l.b16 %v108
    %v143 = vunpack.c.h.b16 %v108
    %v144 = vunpack.c.l.b16 %v109
    %v145 = vunpack.c.h.b16 %v109
    %v146 = vunpack.c.l.b16 %v110
    %v147 = vunpack.c.h.b16 %v110
    %v148 = vunpack.c.l.b16 %v111
    %v149 = vunpack.c.h.b16 %v111
    %v150 = vunpack.c.l.b16 %v112
    %v151 = vunpack.c.h.b16 %v112
    %v152 = vunpack.c.l.b16 %v113
    %v153 = vunpack.c.h.b16 %v113
    %v154 = vunpack.c.l.b16 %v114
    %v155 = vunpack.c.h.b16 %v114
    %v156 = vunpack.c.l.b16 %v115
    %v157 = vunpack.c.h.b16 %v115
    %v158 = vpack.c.b16 %v150, %v142
    %v159 = vpack.c.b16 %v151, %v143
    %v160 = vpack.c.b16 %v152, %v144
    %v161 = vpack.c.b16 %v153, %v145
    %v162 = vpack.c.b16 %v154, %v146
    %v163 = vpack.c.b16 %v155, %v147
    %v164 = vpack.c.b16 %v156, %v148
    %v165 = vpack.c.b16 %v157, %v149
    %vm166 = vcmask 97280
    %v168 = vsel %vm166, %v107, 0
    %vm170 = vcmask 1045504
    %v172 = vsel %vm170, %v158, 0
    %v175 = vsel %vm170, %v159, 0
    %v178 = vsel %vm170, %v160, 0
    %v181 = vsel %vm170, %v161, 0
    %v184 = vsel %vm170, %v162, 0
    %v187 = vsel %vm170, %v163, 0
    %v190 = vsel %vm170, %v164, 0
    %v193 = vsel %vm170, %v165, 0
    %195 = vmatpush.bf16.msra.mxu0 0
    %196 = vmatpush.bf16.msra.mxu0 0
    %197 = vmatpush.bf16.msra.mxu0 0
    %198 = vmatpush.bf16.msra.mxu0 0
    %199 = vmatpush.bf16.msra.mxu0 0
    %200 = vmatpush.bf16.msra.mxu0 0
    %201 = vmatpush.bf16.msra.mxu0 0
    %202 = vmatpush.bf16.msra.mxu0 %v172
    %203 = vmatmul.bf16.gmra.mxu0 %v168
    %v204 = vpop.f32.mrf.mxu0
    %v205 = vadd.f32 %v118, %v204
    %v206 = vpop.f32.mrf.mxu0
    %207 = vdwg.mxu0
    %208 = vmatpush.bf16.msra.mxu0 0
    %209 = vmatpush.bf16.msra.mxu0 0
    %210 = vmatpush.bf16.msra.mxu0 0
    %211 = vmatpush.bf16.msra.mxu0 0
    %212 = vmatpush.bf16.msra.mxu0 0
    %213 = vmatpush.bf16.msra.mxu0 0
    %214 = vmatpush.bf16.msra.mxu0 0
    %215 = vmatpush.bf16.msra.mxu0 %v175
    %216 = vmatmul.bf16.gmra.mxu0 %v168
    %v217 = vpop.f32.mrf.mxu0
    %v218 = vadd.f32 %v119, %v217
    %v219 = vpop.f32.mrf.mxu0
    %220 = vdwg.mxu0
    %221 = vmatpush.bf16.msra.mxu0 0
    %222 = vmatpush.bf16.msra.mxu0 0
    %223 = vmatpush.bf16.msra.mxu0 0
    %224 = vmatpush.bf16.msra.mxu0 0
    %225 = vmatpush.bf16.msra.mxu0 0
    %226 = vmatpush.bf16.msra.mxu0 0
    %227 = vmatpush.bf16.msra.mxu0 0
    %228 = vmatpush.bf16.msra.mxu0 %v178
    %229 = vmatmul.bf16.gmra.mxu0 %v168
    %v230 = vpop.f32.mrf.mxu0
    %v231 = vadd.f32 %v120, %v230
    %v232 = vpop.f32.mrf.mxu0
    %233 = vdwg.mxu0
    %234 = vmatpush.bf16.msra.mxu0 0
    %235 = vmatpush.bf16.msra.mxu0 0
    %236 = vmatpush.bf16.msra.mxu0 0
    %237 = vmatpush.bf16.msra.mxu0 0
    %238 = vmatpush.bf16.msra.mxu0 0
    %239 = vmatpush.bf16.msra.mxu0 0
    %240 = vmatpush.bf16.msra.mxu0 0
    %241 = vmatpush.bf16.msra.mxu0 %v181
    %242 = vmatmul.bf16.gmra.mxu0 %v168
    %v243 = vpop.f32.mrf.mxu0
    %v244 = vadd.f32 %v121, %v243
    %v245 = vpop.f32.mrf.mxu0
    %246 = vdwg.mxu0
    %247 = vmatpush.bf16.msra.mxu0 0
    %248 = vmatpush.bf16.msra.mxu0 0
    %249 = vmatpush.bf16.msra.mxu0 0
    %250 = vmatpush.bf16.msra.mxu0 0
    %251 = vmatpush.bf16.msra.mxu0 0
    %252 = vmatpush.bf16.msra.mxu0 0
    %253 = vmatpush.bf16.msra.mxu0 0
    %254 = vmatpush.bf16.msra.mxu0 %v184
    %255 = vmatmul.bf16.gmra.mxu0 %v168
    %v256 = vpop.f32.mrf.mxu0
    %v257 = vadd.f32 %v122, %v256
    %v258 = vpop.f32.mrf.mxu0
    %259 = vdwg.mxu0
    %260 = vmatpush.bf16.msra.mxu0 0
    %261 = vmatpush.bf16.msra.mxu0 0
    %262 = vmatpush.bf16.msra.mxu0 0
    %263 = vmatpush.bf16.msra.mxu0 0
    %264 = vmatpush.bf16.msra.mxu0 0
    %265 = vmatpush.bf16.msra.mxu0 0
    %266 = vmatpush.bf16.msra.mxu0 0
    %267 = vmatpush.bf16.msra.mxu0 %v187
    %268 = vmatmul.bf16.gmra.mxu0 %v168
    %v269 = vpop.f32.mrf.mxu0
    %v270 = vadd.f32 %v123, %v269
    %v271 = vpop.f32.mrf.mxu0
    %272 = vdwg.mxu0
    %273 = vmatpush.bf16.msra.mxu0 0
    %274 = vmatpush.bf16.msra.mxu0 0
    %275 = vmatpush.bf16.msra.mxu0 0
    %276 = vmatpush.bf16.msra.mxu0 0
    %277 = vmatpush.bf16.msra.mxu0 0
    %278 = vmatpush.bf16.msra.mxu0 0
    %279 = vmatpush.bf16.msra.mxu0 0
    %280 = vmatpush.bf16.msra.mxu0 %v190
    %281 = vmatmul.bf16.gmra.mxu0 %v168
    %v282 = vpop.f32.mrf.mxu0
    %v283 = vadd.f32 %v124, %v282
    %v284 = vpop.f32.mrf.mxu0
    %285 = vdwg.mxu0
    %286 = vmatpush.bf16.msra.mxu0 0
    %287 = vmatpush.bf16.msra.mxu0 0
    %288 = vmatpush.bf16.msra.mxu0 0
    %289 = vmatpush.bf16.msra.mxu0 0
    %290 = vmatpush.bf16.msra.mxu0 0
    %291 = vmatpush.bf16.msra.mxu0 0
    %292 = vmatpush.bf16.msra.mxu0 0
    %293 = vmatpush.bf16.msra.mxu0 %v193
    %294 = vmatmul.bf16.gmra.mxu0 %v168
    %v295 = vpop.f32.mrf.mxu0
    %v296 = vadd.f32 %v125, %v295
    %v297 = vpop.f32.mrf.mxu0
    %298 = vdwg.mxu0
    %v299 = vmax.f32 %v205, 0.0
    %v300 = vmax.f32 %v218, 0.0
    %v301 = vmax.f32 %v231, 0.0
    %v302 = vmax.f32 %v244, 0.0
    %v303 = vmax.f32 %v257, 0.0
    %v304 = vmax.f32 %v270, 0.0
    %v305 = vmax.f32 %v283, 0.0
    %v306 = vmax.f32 %v296, 0.0
    %v307 = vpack.c.bf16 %v299, %v299
    %v308 = vpack.c.bf16 %v300, %v300
    %v309 = vpack.c.bf16 %v301, %v301
    %v310 = vpack.c.bf16 %v302, %v302
    %v311 = vpack.c.bf16 %v303, %v303
    %v312 = vpack.c.bf16 %v304, %v304
    %v313 = vpack.c.bf16 %v305, %v305
    %v314 = vpack.c.bf16 %v306, %v306
    %v315 = vld [vmem:[#allocation5] sm:$0xff]
    %v316 = vld [vmem:[#allocation5 + $0x8] sm:$0xf]
    %v317 = vld [vmem:[#allocation5 + $0xc] sm:$0xff]
    %v318 = vld [vmem:[#allocation5 + $0x14] sm:$0xf]
    %v319 = vld [vmem:[#allocation5 + $0x18] sm:$0xff]
    %v320 = vld [vmem:[#allocation5 + $0x20] sm:$0xf]
    %v321 = vld [vmem:[#allocation5 + $0x24] sm:$0xff]
    %v322 = vld [vmem:[#allocation5 + $0x2c] sm:$0xf]
    %v323 = vld [vmem:[#allocation5 + $0x30] sm:$0xff]
    %v324 = vld [vmem:[#allocation5 + $0x38] sm:$0xf]
    %v325 = vld [vmem:[#allocation5 + $0x3c] sm:$0xff]
    %v326 = vld [vmem:[#allocation5 + $0x44] sm:$0xf]
    %v327 = vld [vmem:[#allocation5 + $0x48] sm:$0xff]
    %v328 = vld [vmem:[#allocation5 + $0x50] sm:$0xf]
    %v329 = vld [vmem:[#allocation5 + $0x54] sm:$0xff]
    %v330 = vld [vmem:[#allocation5 + $0x5c] sm:$0xf]
    %v331 = vld [vmem:[#allocation5 + $0x60] sm:$0xff]
    %v332 = vld [vmem:[#allocation5 + $0x68] sm:$0xf]
    %v333 = vld [vmem:[#allocation5 + $0x6c] sm:$0xff]
    %v334 = vld [vmem:[#allocation5 + $0x74] sm:$0xf]
    %v335 = vld [vmem:[#allocation5 + $0x78] sm:$0xff]
    %v336 = vld [vmem:[#allocation5 + $0x80] sm:$0xf]
    %v337 = vld [vmem:[#allocation5 + $0x84] sm:$0xff]
    %v338 = vld [vmem:[#allocation5 + $0x8c] sm:$0xf]
    %v339 = vld [vmem:[#allocation5 + $0x90] sm:$0xff]
    %v340 = vld [vmem:[#allocation5 + $0x98] sm:$0xf]
    %v341 = vld [vmem:[#allocation5 + $0x9c] sm:$0xff]
    %v342 = vld [vmem:[#allocation5 + $0xa4] sm:$0xf]
    %v343 = vld [vmem:[#allocation5 + $0xa8] sm:$0xff]
    %v344 = vld [vmem:[#allocation5 + $0xb0] sm:$0xf]
    %v345 = vld [vmem:[#allocation5 + $0xb4] sm:$0xff]
    %v346 = vld [vmem:[#allocation5 + $0xbc] sm:$0xf]
    %v347 = vld [vmem:[#allocation5 + $0xc0] sm:$0xff]
    %v348 = vld [vmem:[#allocation5 + $0xc8] sm:$0xf]
    %v349 = vld [vmem:[#allocation5 + $0xcc] sm:$0xff]
    %v350 = vld [vmem:[#allocation5 + $0xd4] sm:$0xf]
    %v351 = vld [vmem:[#allocation5 + $0xd8] sm:$0xff]
    %v352 = vld [vmem:[#allocation5 + $0xe0] sm:$0xf]
    %v353 = vld [vmem:[#allocation5 + $0xe4] sm:$0xff]
    %v354 = vld [vmem:[#allocation5 + $0xec] sm:$0xf]
    %v355 = vld [vmem:[#allocation5 + $0xf0] sm:$0xff]
    %v356 = vld [vmem:[#allocation5 + $0xf8] sm:$0xf]
    %v357 = vld [vmem:[#allocation5 + $0xfc] sm:$0xff]
    %v358 = vld [vmem:[#allocation5 + $0x104] sm:$0xf]
    %v359 = vld [vmem:[#allocation5 + $0x108] sm:$0xff]
    %v360 = vld [vmem:[#allocation5 + $0x110] sm:$0xf]
    %v361 = vld [vmem:[#allocation5 + $0x114] sm:$0xff]
    %v362 = vld [vmem:[#allocation5 + $0x11c] sm:$0xf]
    %v363 = vld [vmem:[#allocation5 + $0x120] sm:$0xff]
    %v364 = vld [vmem:[#allocation5 + $0x128] sm:$0xf]
    %v365 = vld [vmem:[#allocation5 + $0x12c] sm:$0xff]
    %v366 = vld [vmem:[#allocation5 + $0x134] sm:$0xf]
    %v367 = vld [vmem:[#allocation5 + $0x138] sm:$0xff]
    %v368 = vld [vmem:[#allocation5 + $0x140] sm:$0xf]
    %v369 = vld [vmem:[#allocation5 + $0x144] sm:$0xff]
    %v370 = vld [vmem:[#allocation5 + $0x14c] sm:$0xf]
    %v371 = vld [vmem:[#allocation5 + $0x150] sm:$0xff]
    %v372 = vld [vmem:[#allocation5 + $0x158] sm:$0xf]
    %v373 = vld [vmem:[#allocation5 + $0x15c] sm:$0xff]
    %v374 = vld [vmem:[#allocation5 + $0x164] sm:$0xf]
    %v375 = vld [vmem:[#allocation5 + $0x168] sm:$0xff]
    %v376 = vld [vmem:[#allocation5 + $0x170] sm:$0xf]
    %v377 = vld [vmem:[#allocation5 + $0x174] sm:$0xff]
    %v378 = vld [vmem:[#allocation5 + $0x17c] sm:$0xf]
    %v379 = vld [vmem:[#allocation5 + $0x180] sm:$0xff]
    %v380 = vld [vmem:[#allocation5 + $0x188] sm:$0xf]
    %v381 = vld [vmem:[#allocation5 + $0x18c] sm:$0xff]
    %v382 = vld [vmem:[#allocation5 + $0x194] sm:$0xf]
    %v383 = vld [vmem:[#allocation5 + $0x198] sm:$0xff]
    %v384 = vld [vmem:[#allocation5 + $0x1a0] sm:$0xf]
    %v385 = vld [vmem:[#allocation5 + $0x1a4] sm:$0xff]
    %v386 = vld [vmem:[#allocation5 + $0x1ac] sm:$0xf]
    %v387 = vld [vmem:[#allocation5 + $0x1b0] sm:$0xff]
    %v388 = vld [vmem:[#allocation5 + $0x1b8] sm:$0xf]
    %v389 = vld [vmem:[#allocation5 + $0x1bc] sm:$0xff]
    %v390 = vld [vmem:[#allocation5 + $0x1c4] sm:$0xf]
    %v391 = vld [vmem:[#allocation5 + $0x1c8] sm:$0xff]
    %v392 = vld [vmem:[#allocation5 + $0x1d0] sm:$0xf]
    %v393 = vld [vmem:[#allocation5 + $0x1d4] sm:$0xff]
    %v394 = vld [vmem:[#allocation5 + $0x1dc] sm:$0xf]
    %v395 = vld [vmem:[#allocation5 + $0x1e0] sm:$0xff]
    %v396 = vld [vmem:[#allocation5 + $0x1e8] sm:$0xf]
    %v397 = vld [vmem:[#allocation5 + $0x1ec] sm:$0xff]
    %v398 = vld [vmem:[#allocation5 + $0x1f4] sm:$0xf]
    %v399 = vld [vmem:[#allocation5 + $0x1f8] sm:$0xff]
    %v400 = vld [vmem:[#allocation5 + $0x200] sm:$0xf]
    %v401 = vld [vmem:[#allocation5 + $0x204] sm:$0xff]
    %v402 = vld [vmem:[#allocation5 + $0x20c] sm:$0xf]
    %v403 = vld [vmem:[#allocation5 + $0x210] sm:$0xff]
    %v404 = vld [vmem:[#allocation5 + $0x218] sm:$0xf]
    %v405 = vld [vmem:[#allocation5 + $0x21c] sm:$0xff]
    %v406 = vld [vmem:[#allocation5 + $0x224] sm:$0xf]
    %v407 = vld [vmem:[#allocation5 + $0x228] sm:$0xff]
    %v408 = vld [vmem:[#allocation5 + $0x230] sm:$0xf]
    %v409 = vld [vmem:[#allocation5 + $0x234] sm:$0xff]
    %v410 = vld [vmem:[#allocation5 + $0x23c] sm:$0xf]
    %v411 = vld [vmem:[#allocation5 + $0x240] sm:$0xff]
    %v412 = vld [vmem:[#allocation5 + $0x248] sm:$0xf]
    %v413 = vld [vmem:[#allocation5 + $0x24c] sm:$0xff]
    %v414 = vld [vmem:[#allocation5 + $0x254] sm:$0xf]
    %v415 = vld [vmem:[#allocation5 + $0x258] sm:$0xff]
    %v416 = vld [vmem:[#allocation5 + $0x260] sm:$0xf]
    %v417 = vld [vmem:[#allocation5 + $0x264] sm:$0xff]
    %v418 = vld [vmem:[#allocation5 + $0x26c] sm:$0xf]
    %v419 = vld [vmem:[#allocation5 + $0x270] sm:$0xff]
    %v420 = vld [vmem:[#allocation5 + $0x278] sm:$0xf]
    %v421 = vld [vmem:[#allocation5 + $0x27c] sm:$0xff]
    %v422 = vld [vmem:[#allocation5 + $0x284] sm:$0xf]
    %v423 = vld [vmem:[#allocation5 + $0x288] sm:$0xff]
    %v424 = vld [vmem:[#allocation5 + $0x290] sm:$0xf]
    %v425 = vld [vmem:[#allocation5 + $0x294] sm:$0xff]
    %v426 = vld [vmem:[#allocation5 + $0x29c] sm:$0xf]
    %v427 = vld [vmem:[#allocation5 + $0x2a0] sm:$0xff]
    %v428 = vld [vmem:[#allocation5 + $0x2a8] sm:$0xf]
    %v429 = vld [vmem:[#allocation5 + $0x2ac] sm:$0xff]
    %v430 = vld [vmem:[#allocation5 + $0x2b4] sm:$0xf]
    %v431 = vld [vmem:[#allocation5 + $0x2b8] sm:$0xff]
    %v432 = vld [vmem:[#allocation5 + $0x2c0] sm:$0xf]
    %v433 = vld [vmem:[#allocation5 + $0x2c4] sm:$0xff]
    %v434 = vld [vmem:[#allocation5 + $0x2cc] sm:$0xf]
    %v435 = vld [vmem:[#allocation5 + $0x2d0] sm:$0xff]
    %v436 = vld [vmem:[#allocation5 + $0x2d8] sm:$0xf]
    %v437 = vld [vmem:[#allocation5 + $0x2dc] sm:$0xff]
    %v438 = vld [vmem:[#allocation5 + $0x2e4] sm:$0xf]
    %v439 = vld [vmem:[#allocation5 + $0x2e8] sm:$0xff]
    %v440 = vld [vmem:[#allocation5 + $0x2f0] sm:$0xf]
    %v441 = vld [vmem:[#allocation5 + $0x2f4] sm:$0xff]
    %v442 = vld [vmem:[#allocation5 + $0x2fc] sm:$0xf]
    %v443 = vld [vmem:[%s5] sm:$0x7]
    %v445 = vperm.slane %v443, 0
    %v446 = vperm.slane %v443, 1
    %v447 = vperm.slane %v443, 2
    %v579 = vunpack.c.l.b16 %v315
    %v580 = vunpack.c.h.b16 %v315
    %v581 = vunpack.c.l.b16 %v316
    %v582 = vunpack.c.l.b16 %v317
    %v583 = vunpack.c.h.b16 %v317
    %v584 = vunpack.c.l.b16 %v318
    %v585 = vunpack.c.l.b16 %v319
    %v586 = vunpack.c.h.b16 %v319
    %v587 = vunpack.c.l.b16 %v320
    %v588 = vunpack.c.l.b16 %v321
    %v589 = vunpack.c.h.b16 %v321
    %v590 = vunpack.c.l.b16 %v322
    %v591 = vunpack.c.l.b16 %v323
    %v592 = vunpack.c.h.b16 %v323
    %v593 = vunpack.c.l.b16 %v324
    %v594 = vunpack.c.l.b16 %v325
    %v595 = vunpack.c.h.b16 %v325
    %v596 = vunpack.c.l.b16 %v326
    %v597 = vunpack.c.l.b16 %v327
    %v598 = vunpack.c.h.b16 %v327
    %v599 = vunpack.c.l.b16 %v328
    %v600 = vunpack.c.l.b16 %v329
    %v601 = vunpack.c.h.b16 %v329
    %v602 = vunpack.c.l.b16 %v330
    %v603 = vunpack.c.l.b16 %v331
    %v604 = vunpack.c.h.b16 %v331
    %v605 = vunpack.c.l.b16 %v332
    %v606 = vunpack.c.l.b16 %v333
    %v607 = vunpack.c.h.b16 %v333
    %v608 = vunpack.c.l.b16 %v334
    %v609 = vunpack.c.l.b16 %v335
    %v610 = vunpack.c.h.b16 %v335
    %v611 = vunpack.c.l.b16 %v336
    %v612 = vunpack.c.l.b16 %v337
    %v613 = vunpack.c.h.b16 %v337
    %v614 = vunpack.c.l.b16 %v338
    %v615 = vunpack.c.l.b16 %v339
    %v616 = vunpack.c.h.b16 %v339
    %v617 = vunpack.c.l.b16 %v340
    %v618 = vunpack.c.l.b16 %v341
    %v619 = vunpack.c.h.b16 %v341
    %v620 = vunpack.c.l.b16 %v342
    %v621 = vunpack.c.l.b16 %v343
    %v622 = vunpack.c.h.b16 %v343
    %v623 = vunpack.c.l.b16 %v344
    %v624 = vunpack.c.l.b16 %v345
    %v625 = vunpack.c.h.b16 %v345
    %v626 = vunpack.c.l.b16 %v346
    %v627 = vunpack.c.l.b16 %v347
    %v628 = vunpack.c.h.b16 %v347
    %v629 = vunpack.c.l.b16 %v348
    %v630 = vunpack.c.l.b16 %v349
    %v631 = vunpack.c.h.b16 %v349
    %v632 = vunpack.c.l.b16 %v350
    %v633 = vunpack.c.l.b16 %v351
    %v634 = vunpack.c.h.b16 %v351
    %v635 = vunpack.c.l.b16 %v352
    %v636 = vunpack.c.l.b16 %v353
    %v637 = vunpack.c.h.b16 %v353
    %v638 = vunpack.c.l.b16 %v354
    %v639 = vunpack.c.l.b16 %v355
    %v640 = vunpack.c.h.b16 %v355
    %v641 = vunpack.c.l.b16 %v356
    %v642 = vunpack.c.l.b16 %v357
    %v643 = vunpack.c.h.b16 %v357
    %v644 = vunpack.c.l.b16 %v358
    %v645 = vunpack.c.l.b16 %v359
    %v646 = vunpack.c.h.b16 %v359
    %v647 = vunpack.c.l.b16 %v360
    %v648 = vunpack.c.l.b16 %v361
    %v649 = vunpack.c.h.b16 %v361
    %v650 = vunpack.c.l.b16 %v362
    %v651 = vunpack.c.l.b16 %v363
    %v652 = vunpack.c.h.b16 %v363
    %v653 = vunpack.c.l.b16 %v364
    %v654 = vunpack.c.l.b16 %v365
    %v655 = vunpack.c.h.b16 %v365
    %v656 = vunpack.c.l.b16 %v366
    %v657 = vunpack.c.l.b16 %v367
    %v658 = vunpack.c.h.b16 %v367
    %v659 = vunpack.c.l.b16 %v368
    %v660 = vunpack.c.l.b16 %v369
    %v661 = vunpack.c.h.b16 %v369
    %v662 = vunpack.c.l.b16 %v370
    %v663 = vunpack.c.l.b16 %v371
    %v664 = vunpack.c.h.b16 %v371
    %v665 = vunpack.c.l.b16 %v372
    %v666 = vunpack.c.l.b16 %v373
    %v667 = vunpack.c.h.b16 %v373
    %v668 = vunpack.c.l.b16 %v374
    %v669 = vunpack.c.l.b16 %v375
    %v670 = vunpack.c.h.b16 %v375
    %v671 = vunpack.c.l.b16 %v376
    %v672 = vunpack.c.l.b16 %v377
    %v673 = vunpack.c.h.b16 %v377
    %v674 = vunpack.c.l.b16 %v378
    %v675 = vunpack.c.l.b16 %v379
    %v676 = vunpack.c.h.b16 %v379
    %v677 = vunpack.c.l.b16 %v380
    %v678 = vunpack.c.l.b16 %v381
    %v679 = vunpack.c.h.b16 %v381
    %v680 = vunpack.c.l.b16 %v382
    %v681 = vunpack.c.l.b16 %v383
    %v682 = vunpack.c.h.b16 %v383
    %v683 = vunpack.c.l.b16 %v384
    %v684 = vunpack.c.l.b16 %v385
    %v685 = vunpack.c.h.b16 %v385
    %v686 = vunpack.c.l.b16 %v386
    %v687 = vunpack.c.l.b16 %v387
    %v688 = vunpack.c.h.b16 %v387
    %v689 = vunpack.c.l.b16 %v388
    %v690 = vunpack.c.l.b16 %v389
    %v691 = vunpack.c.h.b16 %v389
    %v692 = vunpack.c.l.b16 %v390
    %v693 = vunpack.c.l.b16 %v391
    %v694 = vunpack.c.h.b16 %v391
    %v695 = vunpack.c.l.b16 %v392
    %v696 = vunpack.c.l.b16 %v393
    %v697 = vunpack.c.h.b16 %v393
    %v698 = vunpack.c.l.b16 %v394
    %v699 = vunpack.c.l.b16 %v395
    %v700 = vunpack.c.h.b16 %v395
    %v701 = vunpack.c.l.b16 %v396
    %v702 = vunpack.c.l.b16 %v397
    %v703 = vunpack.c.h.b16 %v397
    %v704 = vunpack.c.l.b16 %v398
    %v705 = vunpack.c.l.b16 %v399
    %v706 = vunpack.c.h.b16 %v399
    %v707 = vunpack.c.l.b16 %v400
    %v708 = vunpack.c.l.b16 %v401
    %v709 = vunpack.c.h.b16 %v401
    %v710 = vunpack.c.l.b16 %v402
    %v711 = vunpack.c.l.b16 %v403
    %v712 = vunpack.c.h.b16 %v403
    %v713 = vunpack.c.l.b16 %v404
    %v714 = vunpack.c.l.b16 %v405
    %v715 = vunpack.c.h.b16 %v405
    %v716 = vunpack.c.l.b16 %v406
    %v717 = vunpack.c.l.b16 %v407
    %v718 = vunpack.c.h.b16 %v407
    %v719 = vunpack.c.l.b16 %v408
    %v720 = vunpack.c.l.b16 %v409
    %v721 = vunpack.c.h.b16 %v409
    %v722 = vunpack.c.l.b16 %v410
    %v723 = vunpack.c.l.b16 %v411
    %v724 = vunpack.c.h.b16 %v411
    %v725 = vunpack.c.l.b16 %v412
    %v726 = vunpack.c.l.b16 %v413
    %v727 = vunpack.c.h.b16 %v413
    %v728 = vunpack.c.l.b16 %v414
    %v729 = vunpack.c.l.b16 %v415
    %v730 = vunpack.c.h.b16 %v415
    %v731 = vunpack.c.l.b16 %v416
    %v732 = vunpack.c.l.b16 %v417
    %v733 = vunpack.c.h.b16 %v417
    %v734 = vunpack.c.l.b16 %v418
    %v735 = vunpack.c.l.b16 %v419
    %v736 = vunpack.c.h.b16 %v419
    %v737 = vunpack.c.l.b16 %v420
    %v738 = vunpack.c.l.b16 %v421
    %v739 = vunpack.c.h.b16 %v421
    %v740 = vunpack.c.l.b16 %v422
    %v741 = vunpack.c.l.b16 %v423
    %v742 = vunpack.c.h.b16 %v423
    %v743 = vunpack.c.l.b16 %v424
    %v744 = vunpack.c.l.b16 %v425
    %v745 = vunpack.c.h.b16 %v425
    %v746 = vunpack.c.l.b16 %v426
    %v747 = vunpack.c.l.b16 %v427
    %v748 = vunpack.c.h.b16 %v427
    %v749 = vunpack.c.l.b16 %v428
    %v750 = vunpack.c.l.b16 %v429
    %v751 = vunpack.c.h.b16 %v429
    %v752 = vunpack.c.l.b16 %v430
    %v753 = vunpack.c.l.b16 %v431
    %v754 = vunpack.c.h.b16 %v431
    %v755 = vunpack.c.l.b16 %v432
    %v756 = vunpack.c.l.b16 %v433
    %v757 = vunpack.c.h.b16 %v433
    %v758 = vunpack.c.l.b16 %v434
    %v759 = vunpack.c.l.b16 %v435
    %v760 = vunpack.c.h.b16 %v435
    %v761 = vunpack.c.l.b16 %v436
    %v762 = vunpack.c.l.b16 %v437
    %v763 = vunpack.c.h.b16 %v437
    %v764 = vunpack.c.l.b16 %v438
    %v765 = vunpack.c.l.b16 %v439
    %v766 = vunpack.c.h.b16 %v439
    %v767 = vunpack.c.l.b16 %v440
    %v768 = vunpack.c.l.b16 %v441
    %v769 = vunpack.c.h.b16 %v441
    %v770 = vunpack.c.l.b16 %v442
    %v771 = vpack.c.b16 %v582, %v579
    %v772 = vpack.c.b16 %v583, %v580
    %v773 = vpack.c.b16 %v584, %v581
    %v774 = vpack.c.b16 %v588, %v585
    %v775 = vpack.c.b16 %v589, %v586
    %v776 = vpack.c.b16 %v590, %v587
    %v777 = vpack.c.b16 %v594, %v591
    %v778 = vpack.c.b16 %v595, %v592
    %v779 = vpack.c.b16 %v596, %v593
    %v780 = vpack.c.b16 %v600, %v597
    %v781 = vpack.c.b16 %v601, %v598
    %v782 = vpack.c.b16 %v602, %v599
    %v783 = vpack.c.b16 %v606, %v603
    %v784 = vpack.c.b16 %v607, %v604
    %v785 = vpack.c.b16 %v608, %v605
    %v786 = vpack.c.b16 %v612, %v609
    %v787 = vpack.c.b16 %v613, %v610
    %v788 = vpack.c.b16 %v614, %v611
    %v789 = vpack.c.b16 %v618, %v615
    %v790 = vpack.c.b16 %v619, %v616
    %v791 = vpack.c.b16 %v620, %v617
    %v792 = vpack.c.b16 %v624, %v621
    %v793 = vpack.c.b16 %v625, %v622
    %v794 = vpack.c.b16 %v626, %v623
    %v795 = vpack.c.b16 %v630, %v627
    %v796 = vpack.c.b16 %v631, %v628
    %v797 = vpack.c.b16 %v632, %v629
    %v798 = vpack.c.b16 %v636, %v633
    %v799 = vpack.c.b16 %v637, %v634
    %v800 = vpack.c.b16 %v638, %v635
    %v801 = vpack.c.b16 %v642, %v639
    %v802 = vpack.c.b16 %v643, %v640
    %v803 = vpack.c.b16 %v644, %v641
    %v804 = vpack.c.b16 %v648, %v645
    %v805 = vpack.c.b16 %v649, %v646
    %v806 = vpack.c.b16 %v650, %v647
    %v807 = vpack.c.b16 %v654, %v651
    %v808 = vpack.c.b16 %v655, %v652
    %v809 = vpack.c.b16 %v656, %v653
    %v810 = vpack.c.b16 %v660, %v657
    %v811 = vpack.c.b16 %v661, %v658
    %v812 = vpack.c.b16 %v662, %v659
    %v813 = vpack.c.b16 %v666, %v663
    %v814 = vpack.c.b16 %v667, %v664
    %v815 = vpack.c.b16 %v668, %v665
    %v816 = vpack.c.b16 %v672, %v669
    %v817 = vpack.c.b16 %v673, %v670
    %v818 = vpack.c.b16 %v674, %v671
    %v819 = vpack.c.b16 %v678, %v675
    %v820 = vpack.c.b16 %v679, %v676
    %v821 = vpack.c.b16 %v680, %v677
    %v822 = vpack.c.b16 %v684, %v681
    %v823 = vpack.c.b16 %v685, %v682
    %v824 = vpack.c.b16 %v686, %v683
    %v825 = vpack.c.b16 %v690, %v687
    %v826 = vpack.c.b16 %v691, %v688
    %v827 = vpack.c.b16 %v692, %v689
    %v828 = vpack.c.b16 %v696, %v693
    %v829 = vpack.c.b16 %v697, %v694
    %v830 = vpack.c.b16 %v698, %v695
    %v831 = vpack.c.b16 %v702, %v699
    %v832 = vpack.c.b16 %v703, %v700
    %v833 = vpack.c.b16 %v704, %v701
    %v834 = vpack.c.b16 %v708, %v705
    %v835 = vpack.c.b16 %v709, %v706
    %v836 = vpack.c.b16 %v710, %v707
    %v837 = vpack.c.b16 %v714, %v711
    %v838 = vpack.c.b16 %v715, %v712
    %v839 = vpack.c.b16 %v716, %v713
    %v840 = vpack.c.b16 %v720, %v717
    %v841 = vpack.c.b16 %v721, %v718
    %v842 = vpack.c.b16 %v722, %v719
    %v843 = vpack.c.b16 %v726, %v723
    %v844 = vpack.c.b16 %v727, %v724
    %v845 = vpack.c.b16 %v728, %v725
    %v846 = vpack.c.b16 %v732, %v729
    %v847 = vpack.c.b16 %v733, %v730
    %v848 = vpack.c.b16 %v734, %v731
    %v849 = vpack.c.b16 %v738, %v735
    %v850 = vpack.c.b16 %v739, %v736
    %v851 = vpack.c.b16 %v740, %v737
    %v852 = vpack.c.b16 %v744, %v741
    %v853 = vpack.c.b16 %v745, %v742
    %v854 = vpack.c.b16 %v746, %v743
    %v855 = vpack.c.b16 %v750, %v747
    %v856 = vpack.c.b16 %v751, %v748
    %v857 = vpack.c.b16 %v752, %v749
    %v858 = vpack.c.b16 %v756, %v753
    %v859 = vpack.c.b16 %v757, %v754
    %v860 = vpack.c.b16 %v758, %v755
    %v861 = vpack.c.b16 %v762, %v759
    %v862 = vpack.c.b16 %v763, %v760
    %v863 = vpack.c.b16 %v764, %v761
    %v864 = vpack.c.b16 %v768, %v765
    %v865 = vpack.c.b16 %v769, %v766
    %v866 = vpack.c.b16 %v770, %v767
    %963 = vmatpush.bf16.msra.mxu0 %v792
    %964 = vmatpush.bf16.msra.mxu0 %v789
    %965 = vmatpush.bf16.msra.mxu0 %v786
    %966 = vmatpush.bf16.msra.mxu0 %v783
    %967 = vmatpush.bf16.msra.mxu0 %v780
    %968 = vmatpush.bf16.msra.mxu0 %v777
    %969 = vmatpush.bf16.msra.mxu0 %v774
    %970 = vmatpush.bf16.msra.mxu0 %v771
    %971 = vmatmul.bf16.gmra.mxu0 %v307
    %v972 = vpop.f32.mrf.mxu0
    %v973 = vadd.f32 %v445, %v972
    %v974 = vpop.f32.mrf.mxu0
    %975 = vdwg.mxu0
    %976 = vmatpush.bf16.msra.mxu0 %v816
    %977 = vmatpush.bf16.msra.mxu0 %v813
    %978 = vmatpush.bf16.msra.mxu0 %v810
    %979 = vmatpush.bf16.msra.mxu0 %v807
    %980 = vmatpush.bf16.msra.mxu0 %v804
    %981 = vmatpush.bf16.msra.mxu0 %v801
    %982 = vmatpush.bf16.msra.mxu0 %v798
    %983 = vmatpush.bf16.msra.mxu0 %v795
    %984 = vmatmul.bf16.gmra.mxu0 %v308
    %v985 = vpop.f32.mrf.mxu0
    %v986 = vadd.f32 %v973, %v985
    %v987 = vpop.f32.mrf.mxu0
    %988 = vdwg.mxu0
    %989 = vmatpush.bf16.msra.mxu0 %v840
    %990 = vmatpush.bf16.msra.mxu0 %v837
    %991 = vmatpush.bf16.msra.mxu0 %v834
    %992 = vmatpush.bf16.msra.mxu0 %v831
    %993 = vmatpush.bf16.msra.mxu0 %v828
    %994 = vmatpush.bf16.msra.mxu0 %v825
    %995 = vmatpush.bf16.msra.mxu0 %v822
    %996 = vmatpush.bf16.msra.mxu0 %v819
    %997 = vmatmul.bf16.gmra.mxu0 %v309
    %v998 = vpop.f32.mrf.mxu0
    %v999 = vadd.f32 %v986, %v998
    %v1000 = vpop.f32.mrf.mxu0
    %1001 = vdwg.mxu0
    %1002 = vmatpush.bf16.msra.mxu0 %v864
    %1003 = vmatpush.bf16.msra.mxu0 %v861
    %1004 = vmatpush.bf16.msra.mxu0 %v858
    %1005 = vmatpush.bf16.msra.mxu0 %v855
    %1006 = vmatpush.bf16.msra.mxu0 %v852
    %1007 = vmatpush.bf16.msra.mxu0 %v849
    %1008 = vmatpush.bf16.msra.mxu0 %v846
    %1009 = vmatpush.bf16.msra.mxu0 %v843
    %1010 = vmatmul.bf16.gmra.mxu0 %v310
    %v1011 = vpop.f32.mrf.mxu0
    %v1012 = vadd.f32 %v999, %v1011
    %v1013 = vpop.f32.mrf.mxu0
    %1014 = vdwg.mxu0
    %1015 = vmatpush.bf16.msra.mxu0 %v793
    %1016 = vmatpush.bf16.msra.mxu0 %v790
    %1017 = vmatpush.bf16.msra.mxu0 %v787
    %1018 = vmatpush.bf16.msra.mxu0 %v784
    %1019 = vmatpush.bf16.msra.mxu0 %v781
    %1020 = vmatpush.bf16.msra.mxu0 %v778
    %1021 = vmatpush.bf16.msra.mxu0 %v775
    %1022 = vmatpush.bf16.msra.mxu0 %v772
    %1023 = vmatmul.bf16.gmra.mxu0 %v307
    %v1024 = vpop.f32.mrf.mxu0
    %v1025 = vadd.f32 %v446, %v1024
    %v1026 = vpop.f32.mrf.mxu0
    %1027 = vdwg.mxu0
    %1028 = vmatpush.bf16.msra.mxu0 %v817
    %1029 = vmatpush.bf16.msra.mxu0 %v814
    %1030 = vmatpush.bf16.msra.mxu0 %v811
    %1031 = vmatpush.bf16.msra.mxu0 %v808
    %1032 = vmatpush.bf16.msra.mxu0 %v805
    %1033 = vmatpush.bf16.msra.mxu0 %v802
    %1034 = vmatpush.bf16.msra.mxu0 %v799
    %1035 = vmatpush.bf16.msra.mxu0 %v796
    %1036 = vmatmul.bf16.gmra.mxu0 %v308
    %v1037 = vpop.f32.mrf.mxu0
    %v1038 = vadd.f32 %v1025, %v1037
    %v1039 = vpop.f32.mrf.mxu0
    %1040 = vdwg.mxu0
    %1041 = vmatpush.bf16.msra.mxu0 %v841
    %1042 = vmatpush.bf16.msra.mxu0 %v838
    %1043 = vmatpush.bf16.msra.mxu0 %v835
    %1044 = vmatpush.bf16.msra.mxu0 %v832
    %1045 = vmatpush.bf16.msra.mxu0 %v829
    %1046 = vmatpush.bf16.msra.mxu0 %v826
    %1047 = vmatpush.bf16.msra.mxu0 %v823
    %1048 = vmatpush.bf16.msra.mxu0 %v820
    %1049 = vmatmul.bf16.gmra.mxu0 %v309
    %v1050 = vpop.f32.mrf.mxu0
    %v1051 = vadd.f32 %v1038, %v1050
    %v1052 = vpop.f32.mrf.mxu0
    %1053 = vdwg.mxu0
    %1054 = vmatpush.bf16.msra.mxu0 %v865
    %1055 = vmatpush.bf16.msra.mxu0 %v862
    %1056 = vmatpush.bf16.msra.mxu0 %v859
    %1057 = vmatpush.bf16.msra.mxu0 %v856
    %1058 = vmatpush.bf16.msra.mxu0 %v853
    %1059 = vmatpush.bf16.msra.mxu0 %v850
    %1060 = vmatpush.bf16.msra.mxu0 %v847
    %1061 = vmatpush.bf16.msra.mxu0 %v844
    %1062 = vmatmul.bf16.gmra.mxu0 %v310
    %v1063 = vpop.f32.mrf.mxu0
    %v1064 = vadd.f32 %v1051, %v1063
    %v1065 = vpop.f32.mrf.mxu0
    %1066 = vdwg.mxu0
    %1067 = vmatpush.bf16.msra.mxu0 %v794
    %1068 = vmatpush.bf16.msra.mxu0 %v791
    %1069 = vmatpush.bf16.msra.mxu0 %v788
    %1070 = vmatpush.bf16.msra.mxu0 %v785
    %1071 = vmatpush.bf16.msra.mxu0 %v782
    %1072 = vmatpush.bf16.msra.mxu0 %v779
    %1073 = vmatpush.bf16.msra.mxu0 %v776
    %1074 = vmatpush.bf16.msra.mxu0 %v773
    %1075 = vmatmul.bf16.gmra.mxu0 %v307
    %v1076 = vpop.f32.mrf.mxu0
    %v1077 = vadd.f32 %v447, %v1076
    %v1078 = vpop.f32.mrf.mxu0
    %1079 = vdwg.mxu0
    %1080 = vmatpush.bf16.msra.mxu0 %v818
    %1081 = vmatpush.bf16.msra.mxu0 %v815
    %1082 = vmatpush.bf16.msra.mxu0 %v812
    %1083 = vmatpush.bf16.msra.mxu0 %v809
    %1084 = vmatpush.bf16.msra.mxu0 %v806
    %1085 = vmatpush.bf16.msra.mxu0 %v803
    %1086 = vmatpush.bf16.msra.mxu0 %v800
    %1087 = vmatpush.bf16.msra.mxu0 %v797
    %1088 = vmatmul.bf16.gmra.mxu0 %v308
    %v1089 = vpop.f32.mrf.mxu0
    %v1090 = vadd.f32 %v1077, %v1089
    %v1091 = vpop.f32.mrf.mxu0
    %1092 = vdwg.mxu0
    %1093 = vmatpush.bf16.msra.mxu0 %v842
    %1094 = vmatpush.bf16.msra.mxu0 %v839
    %1095 = vmatpush.bf16.msra.mxu0 %v836
    %1096 = vmatpush.bf16.msra.mxu0 %v833
    %1097 = vmatpush.bf16.msra.mxu0 %v830
    %1098 = vmatpush.bf16.msra.mxu0 %v827
    %1099 = vmatpush.bf16.msra.mxu0 %v824
    %1100 = vmatpush.bf16.msra.mxu0 %v821
    %1101 = vmatmul.bf16.gmra.mxu0 %v309
    %v1102 = vpop.f32.mrf.mxu0
    %v1103 = vadd.f32 %v1090, %v1102
    %v1104 = vpop.f32.mrf.mxu0
    %1105 = vdwg.mxu0
    %1106 = vmatpush.bf16.msra.mxu0 %v866
    %1107 = vmatpush.bf16.msra.mxu0 %v863
    %1108 = vmatpush.bf16.msra.mxu0 %v860
    %1109 = vmatpush.bf16.msra.mxu0 %v857
    %1110 = vmatpush.bf16.msra.mxu0 %v854
    %1111 = vmatpush.bf16.msra.mxu0 %v851
    %1112 = vmatpush.bf16.msra.mxu0 %v848
    %1113 = vmatpush.bf16.msra.mxu0 %v845
    %1114 = vmatmul.bf16.gmra.mxu0 %v310
    %v1115 = vpop.f32.mrf.mxu0
    %v1116 = vadd.f32 %v1103, %v1115
    %v1117 = vpop.f32.mrf.mxu0
    %1118 = vdwg.mxu0
    %v1119 = vmax.f32 %v1012, 0.0
    %v1120 = vmax.f32 %v1064, 0.0
    %v1121 = vmax.f32 %v1116, 0.0
    %v1122 = vld [vmem:[#allocation7] sm:$0xff]
    %v1123 = vld [vmem:[#allocation7 + $0x8] sm:$0xf]
    %v1124 = vld [vmem:[#allocation7 + $0xc] sm:$0xff]
    %v1125 = vld [vmem:[#allocation7 + $0x14] sm:$0xf]
    %v1126 = vld [vmem:[#allocation7 + $0x18] sm:$0xff]
    %v1127 = vld [vmem:[#allocation7 + $0x20] sm:$0xf]
    %v1128 = vld [vmem:[#allocation7 + $0x24] sm:$0xff]
    %v1129 = vld [vmem:[#allocation7 + $0x2c] sm:$0xf]
    %v1130 = vld [vmem:[#allocation7 + $0x30] sm:$0xff]
    %v1131 = vld [vmem:[#allocation7 + $0x38] sm:$0xf]
    %v1132 = vld [vmem:[#allocation7 + $0x3c] sm:$0xff]
    %v1133 = vld [vmem:[#allocation7 + $0x44] sm:$0xf]
    %v1134 = vld [vmem:[#allocation7 + $0x48] sm:$0xff]
    %v1135 = vld [vmem:[#allocation7 + $0x50] sm:$0xf]
    %v1136 = vld [vmem:[#allocation7 + $0x54] sm:$0xff]
    %v1137 = vld [vmem:[#allocation7 + $0x5c] sm:$0xf]
    %v1138 = vld [vmem:[#allocation7 + $0x60] sm:$0xff]
    %v1139 = vld [vmem:[#allocation7 + $0x68] sm:$0xf]
    %v1140 = vld [vmem:[#allocation7 + $0x6c] sm:$0xff]
    %v1141 = vld [vmem:[#allocation7 + $0x74] sm:$0xf]
    %v1142 = vld [vmem:[#allocation7 + $0x78] sm:$0xff]
    %v1143 = vld [vmem:[#allocation7 + $0x80] sm:$0xf]
    %v1144 = vld [vmem:[#allocation7 + $0x84] sm:$0xff]
    %v1145 = vld [vmem:[#allocation7 + $0x8c] sm:$0xf]
    %v1146 = vld [vmem:[#allocation7 + $0x90] sm:$0xff]
    %v1147 = vld [vmem:[#allocation7 + $0x98] sm:$0xf]
    %v1148 = vld [vmem:[#allocation7 + $0x9c] sm:$0xff]
    %v1149 = vld [vmem:[#allocation7 + $0xa4] sm:$0xf]
    %v1150 = vld [vmem:[#allocation7 + $0xa8] sm:$0xff]
    %v1151 = vld [vmem:[#allocation7 + $0xb0] sm:$0xf]
    %v1152 = vld [vmem:[#allocation7 + $0xb4] sm:$0xff]
    %v1153 = vld [vmem:[#allocation7 + $0xbc] sm:$0xf]
    %v1154 = vld [vmem:[#allocation7 + $0xc0] sm:$0xff]
    %v1155 = vld [vmem:[#allocation7 + $0xc8] sm:$0xf]
    %v1156 = vld [vmem:[#allocation7 + $0xcc] sm:$0xff]
    %v1157 = vld [vmem:[#allocation7 + $0xd4] sm:$0xf]
    %v1158 = vld [vmem:[#allocation7 + $0xd8] sm:$0xff]
    %v1159 = vld [vmem:[#allocation7 + $0xe0] sm:$0xf]
    %v1160 = vld [vmem:[#allocation7 + $0xe4] sm:$0xff]
    %v1161 = vld [vmem:[#allocation7 + $0xec] sm:$0xf]
    %v1162 = vld [vmem:[#allocation7 + $0xf0] sm:$0xff]
    %v1163 = vld [vmem:[#allocation7 + $0xf8] sm:$0xf]
    %v1164 = vld [vmem:[#allocation7 + $0xfc] sm:$0xff]
    %v1165 = vld [vmem:[#allocation7 + $0x104] sm:$0xf]
    %v1166 = vld [vmem:[#allocation7 + $0x108] sm:$0xff]
    %v1167 = vld [vmem:[#allocation7 + $0x110] sm:$0xf]
    %v1168 = vld [vmem:[#allocation7 + $0x114] sm:$0xff]
    %v1169 = vld [vmem:[#allocation7 + $0x11c] sm:$0xf]
    %v1170 = vld [vmem:[#allocation7 + $0x120] sm:$0xff]
    %v1171 = vld [vmem:[#allocation7 + $0x128] sm:$0xf]
    %v1172 = vld [vmem:[#allocation7 + $0x12c] sm:$0xff]
    %v1173 = vld [vmem:[#allocation7 + $0x134] sm:$0xf]
    %v1174 = vld [vmem:[#allocation7 + $0x138] sm:$0xff]
    %v1175 = vld [vmem:[#allocation7 + $0x140] sm:$0xf]
    %v1176 = vld [vmem:[#allocation7 + $0x144] sm:$0xff]
    %v1177 = vld [vmem:[#allocation7 + $0x14c] sm:$0xf]
    %v1178 = vld [vmem:[#allocation7 + $0x150] sm:$0xff]
    %v1179 = vld [vmem:[#allocation7 + $0x158] sm:$0xf]
    %v1180 = vld [vmem:[#allocation7 + $0x15c] sm:$0xff]
    %v1181 = vld [vmem:[#allocation7 + $0x164] sm:$0xf]
    %v1182 = vld [vmem:[#allocation7 + $0x168] sm:$0xff]
    %v1183 = vld [vmem:[#allocation7 + $0x170] sm:$0xf]
    %v1184 = vld [vmem:[#allocation7 + $0x174] sm:$0xff]
    %v1185 = vld [vmem:[#allocation7 + $0x17c] sm:$0xf]
    %v1186 = vld [vmem:[#allocation7 + $0x180] sm:$0xff]
    %v1187 = vld [vmem:[#allocation7 + $0x188] sm:$0xf]
    %v1188 = vld [vmem:[#allocation7 + $0x18c] sm:$0xff]
    %v1189 = vld [vmem:[#allocation7 + $0x194] sm:$0xf]
    %v1190 = vld [vmem:[#allocation7 + $0x198] sm:$0xff]
    %v1191 = vld [vmem:[#allocation7 + $0x1a0] sm:$0xf]
    %v1192 = vld [vmem:[#allocation7 + $0x1a4] sm:$0xff]
    %v1193 = vld [vmem:[#allocation7 + $0x1ac] sm:$0xf]
    %v1194 = vld [vmem:[#allocation7 + $0x1b0] sm:$0xff]
    %v1195 = vld [vmem:[#allocation7 + $0x1b8] sm:$0xf]
    %v1196 = vld [vmem:[#allocation7 + $0x1bc] sm:$0xff]
    %v1197 = vld [vmem:[#allocation7 + $0x1c4] sm:$0xf]
    %v1198 = vld [vmem:[#allocation7 + $0x1c8] sm:$0xff]
    %v1199 = vld [vmem:[#allocation7 + $0x1d0] sm:$0xf]
    %v1200 = vld [vmem:[#allocation7 + $0x1d4] sm:$0xff]
    %v1201 = vld [vmem:[#allocation7 + $0x1dc] sm:$0xf]
    %v1202 = vld [vmem:[#allocation7 + $0x1e0] sm:$0xff]
    %v1203 = vld [vmem:[#allocation7 + $0x1e8] sm:$0xf]
    %v1204 = vld [vmem:[#allocation7 + $0x1ec] sm:$0xff]
    %v1205 = vld [vmem:[#allocation7 + $0x1f4] sm:$0xf]
    %v1206 = vld [vmem:[#allocation7 + $0x1f8] sm:$0xff]
    %v1207 = vld [vmem:[#allocation7 + $0x200] sm:$0xf]
    %v1208 = vld [vmem:[#allocation7 + $0x204] sm:$0xff]
    %v1209 = vld [vmem:[#allocation7 + $0x20c] sm:$0xf]
    %v1210 = vld [vmem:[#allocation7 + $0x210] sm:$0xff]
    %v1211 = vld [vmem:[#allocation7 + $0x218] sm:$0xf]
    %v1212 = vld [vmem:[#allocation7 + $0x21c] sm:$0xff]
    %v1213 = vld [vmem:[#allocation7 + $0x224] sm:$0xf]
    %v1214 = vld [vmem:[#allocation7 + $0x228] sm:$0xff]
    %v1215 = vld [vmem:[#allocation7 + $0x230] sm:$0xf]
    %v1216 = vld [vmem:[#allocation7 + $0x234] sm:$0xff]
    %v1217 = vld [vmem:[#allocation7 + $0x23c] sm:$0xf]
    %v1218 = vld [vmem:[#allocation7 + $0x240] sm:$0xff]
    %v1219 = vld [vmem:[#allocation7 + $0x248] sm:$0xf]
    %v1220 = vld [vmem:[#allocation7 + $0x24c] sm:$0xff]
    %v1221 = vld [vmem:[#allocation7 + $0x254] sm:$0xf]
    %v1222 = vld [vmem:[#allocation7 + $0x258] sm:$0xff]
    %v1223 = vld [vmem:[#allocation7 + $0x260] sm:$0xf]
    %v1224 = vld [vmem:[#allocation7 + $0x264] sm:$0xff]
    %v1225 = vld [vmem:[#allocation7 + $0x26c] sm:$0xf]
    %v1226 = vld [vmem:[#allocation7 + $0x270] sm:$0xff]
    %v1227 = vld [vmem:[#allocation7 + $0x278] sm:$0xf]
    %v1228 = vld [vmem:[#allocation7 + $0x27c] sm:$0xff]
    %v1229 = vld [vmem:[#allocation7 + $0x284] sm:$0xf]
    %v1230 = vld [vmem:[#allocation7 + $0x288] sm:$0xff]
    %v1231 = vld [vmem:[#allocation7 + $0x290] sm:$0xf]
    %v1232 = vld [vmem:[#allocation7 + $0x294] sm:$0xff]
    %v1233 = vld [vmem:[#allocation7 + $0x29c] sm:$0xf]
    %v1234 = vld [vmem:[#allocation7 + $0x2a0] sm:$0xff]
    %v1235 = vld [vmem:[#allocation7 + $0x2a8] sm:$0xf]
    %v1236 = vld [vmem:[#allocation7 + $0x2ac] sm:$0xff]
    %v1237 = vld [vmem:[#allocation7 + $0x2b4] sm:$0xf]
    %v1238 = vld [vmem:[#allocation7 + $0x2b8] sm:$0xff]
    %v1239 = vld [vmem:[#allocation7 + $0x2c0] sm:$0xf]
    %v1240 = vld [vmem:[#allocation7 + $0x2c4] sm:$0xff]
    %v1241 = vld [vmem:[#allocation7 + $0x2cc] sm:$0xf]
    %v1242 = vld [vmem:[#allocation7 + $0x2d0] sm:$0xff]
    %v1243 = vld [vmem:[#allocation7 + $0x2d8] sm:$0xf]
    %v1244 = vld [vmem:[#allocation7 + $0x2dc] sm:$0xff]
    %v1245 = vld [vmem:[#allocation7 + $0x2e4] sm:$0xf]
    %v1246 = vld [vmem:[#allocation7 + $0x2e8] sm:$0xff]
    %v1247 = vld [vmem:[#allocation7 + $0x2f0] sm:$0xf]
    %v1248 = vld [vmem:[#allocation7 + $0x2f4] sm:$0xff]
    %v1249 = vld [vmem:[#allocation7 + $0x2fc] sm:$0xf]
    %v1250 = vld [vmem:[%s7] sm:$0x7]
    %v1252 = vperm.slane %v1250, 0
    %v1253 = vperm.slane %v1250, 1
    %v1254 = vperm.slane %v1250, 2
    %v1386 = vunpack.c.l.b16 %v1122
    %v1387 = vunpack.c.h.b16 %v1122
    %v1388 = vunpack.c.l.b16 %v1123
    %v1389 = vunpack.c.l.b16 %v1124
    %v1390 = vunpack.c.h.b16 %v1124
    %v1391 = vunpack.c.l.b16 %v1125
    %v1392 = vunpack.c.l.b16 %v1126
    %v1393 = vunpack.c.h.b16 %v1126
    %v1394 = vunpack.c.l.b16 %v1127
    %v1395 = vunpack.c.l.b16 %v1128
    %v1396 = vunpack.c.h.b16 %v1128
    %v1397 = vunpack.c.l.b16 %v1129
    %v1398 = vunpack.c.l.b16 %v1130
    %v1399 = vunpack.c.h.b16 %v1130
    %v1400 = vunpack.c.l.b16 %v1131
    %v1401 = vunpack.c.l.b16 %v1132
    %v1402 = vunpack.c.h.b16 %v1132
    %v1403 = vunpack.c.l.b16 %v1133
    %v1404 = vunpack.c.l.b16 %v1134
    %v1405 = vunpack.c.h.b16 %v1134
    %v1406 = vunpack.c.l.b16 %v1135
    %v1407 = vunpack.c.l.b16 %v1136
    %v1408 = vunpack.c.h.b16 %v1136
    %v1409 = vunpack.c.l.b16 %v1137
    %v1410 = vunpack.c.l.b16 %v1138
    %v1411 = vunpack.c.h.b16 %v1138
    %v1412 = vunpack.c.l.b16 %v1139
    %v1413 = vunpack.c.l.b16 %v1140
    %v1414 = vunpack.c.h.b16 %v1140
    %v1415 = vunpack.c.l.b16 %v1141
    %v1416 = vunpack.c.l.b16 %v1142
    %v1417 = vunpack.c.h.b16 %v1142
    %v1418 = vunpack.c.l.b16 %v1143
    %v1419 = vunpack.c.l.b16 %v1144
    %v1420 = vunpack.c.h.b16 %v1144
    %v1421 = vunpack.c.l.b16 %v1145
    %v1422 = vunpack.c.l.b16 %v1146
    %v1423 = vunpack.c.h.b16 %v1146
    %v1424 = vunpack.c.l.b16 %v1147
    %v1425 = vunpack.c.l.b16 %v1148
    %v1426 = vunpack.c.h.b16 %v1148
    %v1427 = vunpack.c.l.b16 %v1149
    %v1428 = vunpack.c.l.b16 %v1150
    %v1429 = vunpack.c.h.b16 %v1150
    %v1430 = vunpack.c.l.b16 %v1151
    %v1431 = vunpack.c.l.b16 %v1152
    %v1432 = vunpack.c.h.b16 %v1152
    %v1433 = vunpack.c.l.b16 %v1153
    %v1434 = vunpack.c.l.b16 %v1154
    %v1435 = vunpack.c.h.b16 %v1154
    %v1436 = vunpack.c.l.b16 %v1155
    %v1437 = vunpack.c.l.b16 %v1156
    %v1438 = vunpack.c.h.b16 %v1156
    %v1439 = vunpack.c.l.b16 %v1157
    %v1440 = vunpack.c.l.b16 %v1158
    %v1441 = vunpack.c.h.b16 %v1158
    %v1442 = vunpack.c.l.b16 %v1159
    %v1443 = vunpack.c.l.b16 %v1160
    %v1444 = vunpack.c.h.b16 %v1160
    %v1445 = vunpack.c.l.b16 %v1161
    %v1446 = vunpack.c.l.b16 %v1162
    %v1447 = vunpack.c.h.b16 %v1162
    %v1448 = vunpack.c.l.b16 %v1163
    %v1449 = vunpack.c.l.b16 %v1164
    %v1450 = vunpack.c.h.b16 %v1164
    %v1451 = vunpack.c.l.b16 %v1165
    %v1452 = vunpack.c.l.b16 %v1166
    %v1453 = vunpack.c.h.b16 %v1166
    %v1454 = vunpack.c.l.b16 %v1167
    %v1455 = vunpack.c.l.b16 %v1168
    %v1456 = vunpack.c.h.b16 %v1168
    %v1457 = vunpack.c.l.b16 %v1169
    %v1458 = vunpack.c.l.b16 %v1170
    %v1459 = vunpack.c.h.b16 %v1170
    %v1460 = vunpack.c.l.b16 %v1171
    %v1461 = vunpack.c.l.b16 %v1172
    %v1462 = vunpack.c.h.b16 %v1172
    %v1463 = vunpack.c.l.b16 %v1173
    %v1464 = vunpack.c.l.b16 %v1174
    %v1465 = vunpack.c.h.b16 %v1174
    %v1466 = vunpack.c.l.b16 %v1175
    %v1467 = vunpack.c.l.b16 %v1176
    %v1468 = vunpack.c.h.b16 %v1176
    %v1469 = vunpack.c.l.b16 %v1177
    %v1470 = vunpack.c.l.b16 %v1178
    %v1471 = vunpack.c.h.b16 %v1178
    %v1472 = vunpack.c.l.b16 %v1179
    %v1473 = vunpack.c.l.b16 %v1180
    %v1474 = vunpack.c.h.b16 %v1180
    %v1475 = vunpack.c.l.b16 %v1181
    %v1476 = vunpack.c.l.b16 %v1182
    %v1477 = vunpack.c.h.b16 %v1182
    %v1478 = vunpack.c.l.b16 %v1183
    %v1479 = vunpack.c.l.b16 %v1184
    %v1480 = vunpack.c.h.b16 %v1184
    %v1481 = vunpack.c.l.b16 %v1185
    %v1482 = vunpack.c.l.b16 %v1186
    %v1483 = vunpack.c.h.b16 %v1186
    %v1484 = vunpack.c.l.b16 %v1187
    %v1485 = vunpack.c.l.b16 %v1188
    %v1486 = vunpack.c.h.b16 %v1188
    %v1487 = vunpack.c.l.b16 %v1189
    %v1488 = vunpack.c.l.b16 %v1190
    %v1489 = vunpack.c.h.b16 %v1190
    %v1490 = vunpack.c.l.b16 %v1191
    %v1491 = vunpack.c.l.b16 %v1192
    %v1492 = vunpack.c.h.b16 %v1192
    %v1493 = vunpack.c.l.b16 %v1193
    %v1494 = vunpack.c.l.b16 %v1194
    %v1495 = vunpack.c.h.b16 %v1194
    %v1496 = vunpack.c.l.b16 %v1195
    %v1497 = vunpack.c.l.b16 %v1196
    %v1498 = vunpack.c.h.b16 %v1196
    %v1499 = vunpack.c.l.b16 %v1197
    %v1500 = vunpack.c.l.b16 %v1198
    %v1501 = vunpack.c.h.b16 %v1198
    %v1502 = vunpack.c.l.b16 %v1199
    %v1503 = vunpack.c.l.b16 %v1200
    %v1504 = vunpack.c.h.b16 %v1200
    %v1505 = vunpack.c.l.b16 %v1201
    %v1506 = vunpack.c.l.b16 %v1202
    %v1507 = vunpack.c.h.b16 %v1202
    %v1508 = vunpack.c.l.b16 %v1203
    %v1509 = vunpack.c.l.b16 %v1204
    %v1510 = vunpack.c.h.b16 %v1204
    %v1511 = vunpack.c.l.b16 %v1205
    %v1512 = vunpack.c.l.b16 %v1206
    %v1513 = vunpack.c.h.b16 %v1206
    %v1514 = vunpack.c.l.b16 %v1207
    %v1515 = vunpack.c.l.b16 %v1208
    %v1516 = vunpack.c.h.b16 %v1208
    %v1517 = vunpack.c.l.b16 %v1209
    %v1518 = vunpack.c.l.b16 %v1210
    %v1519 = vunpack.c.h.b16 %v1210
    %v1520 = vunpack.c.l.b16 %v1211
    %v1521 = vunpack.c.l.b16 %v1212
    %v1522 = vunpack.c.h.b16 %v1212
    %v1523 = vunpack.c.l.b16 %v1213
    %v1524 = vunpack.c.l.b16 %v1214
    %v1525 = vunpack.c.h.b16 %v1214
    %v1526 = vunpack.c.l.b16 %v1215
    %v1527 = vunpack.c.l.b16 %v1216
    %v1528 = vunpack.c.h.b16 %v1216
    %v1529 = vunpack.c.l.b16 %v1217
    %v1530 = vunpack.c.l.b16 %v1218
    %v1531 = vunpack.c.h.b16 %v1218
    %v1532 = vunpack.c.l.b16 %v1219
    %v1533 = vunpack.c.l.b16 %v1220
    %v1534 = vunpack.c.h.b16 %v1220
    %v1535 = vunpack.c.l.b16 %v1221
    %v1536 = vunpack.c.l.b16 %v1222
    %v1537 = vunpack.c.h.b16 %v1222
    %v1538 = vunpack.c.l.b16 %v1223
    %v1539 = vunpack.c.l.b16 %v1224
    %v1540 = vunpack.c.h.b16 %v1224
    %v1541 = vunpack.c.l.b16 %v1225
    %v1542 = vunpack.c.l.b16 %v1226
    %v1543 = vunpack.c.h.b16 %v1226
    %v1544 = vunpack.c.l.b16 %v1227
    %v1545 = vunpack.c.l.b16 %v1228
    %v1546 = vunpack.c.h.b16 %v1228
    %v1547 = vunpack.c.l.b16 %v1229
    %v1548 = vunpack.c.l.b16 %v1230
    %v1549 = vunpack.c.h.b16 %v1230
    %v1550 = vunpack.c.l.b16 %v1231
    %v1551 = vunpack.c.l.b16 %v1232
    %v1552 = vunpack.c.h.b16 %v1232
    %v1553 = vunpack.c.l.b16 %v1233
    %v1554 = vunpack.c.l.b16 %v1234
    %v1555 = vunpack.c.h.b16 %v1234
    %v1556 = vunpack.c.l.b16 %v1235
    %v1557 = vunpack.c.l.b16 %v1236
    %v1558 = vunpack.c.h.b16 %v1236
    %v1559 = vunpack.c.l.b16 %v1237
    %v1560 = vunpack.c.l.b16 %v1238
    %v1561 = vunpack.c.h.b16 %v1238
    %v1562 = vunpack.c.l.b16 %v1239
    %v1563 = vunpack.c.l.b16 %v1240
    %v1564 = vunpack.c.h.b16 %v1240
    %v1565 = vunpack.c.l.b16 %v1241
    %v1566 = vunpack.c.l.b16 %v1242
    %v1567 = vunpack.c.h.b16 %v1242
    %v1568 = vunpack.c.l.b16 %v1243
    %v1569 = vunpack.c.l.b16 %v1244
    %v1570 = vunpack.c.h.b16 %v1244
    %v1571 = vunpack.c.l.b16 %v1245
    %v1572 = vunpack.c.l.b16 %v1246
    %v1573 = vunpack.c.h.b16 %v1246
    %v1574 = vunpack.c.l.b16 %v1247
    %v1575 = vunpack.c.l.b16 %v1248
    %v1576 = vunpack.c.h.b16 %v1248
    %v1577 = vunpack.c.l.b16 %v1249
    %v1578 = vpack.c.b16 %v1389, %v1386
    %v1579 = vpack.c.b16 %v1390, %v1387
    %v1580 = vpack.c.b16 %v1391, %v1388
    %v1581 = vpack.c.b16 %v1395, %v1392
    %v1582 = vpack.c.b16 %v1396, %v1393
    %v1583 = vpack.c.b16 %v1397, %v1394
    %v1584 = vpack.c.b16 %v1401, %v1398
    %v1585 = vpack.c.b16 %v1402, %v1399
    %v1586 = vpack.c.b16 %v1403, %v1400
    %v1587 = vpack.c.b16 %v1407, %v1404
    %v1588 = vpack.c.b16 %v1408, %v1405
    %v1589 = vpack.c.b16 %v1409, %v1406
    %v1590 = vpack.c.b16 %v1413, %v1410
    %v1591 = vpack.c.b16 %v1414, %v1411
    %v1592 = vpack.c.b16 %v1415, %v1412
    %v1593 = vpack.c.b16 %v1419, %v1416
    %v1594 = vpack.c.b16 %v1420, %v1417
    %v1595 = vpack.c.b16 %v1421, %v1418
    %v1596 = vpack.c.b16 %v1425, %v1422
    %v1597 = vpack.c.b16 %v1426, %v1423
    %v1598 = vpack.c.b16 %v1427, %v1424
    %v1599 = vpack.c.b16 %v1431, %v1428
    %v1600 = vpack.c.b16 %v1432, %v1429
    %v1601 = vpack.c.b16 %v1433, %v1430
    %v1602 = vpack.c.b16 %v1437, %v1434
    %v1603 = vpack.c.b16 %v1438, %v1435
    %v1604 = vpack.c.b16 %v1439, %v1436
    %v1605 = vpack.c.b16 %v1443, %v1440
    %v1606 = vpack.c.b16 %v1444, %v1441
    %v1607 = vpack.c.b16 %v1445, %v1442
    %v1608 = vpack.c.b16 %v1449, %v1446
    %v1609 = vpack.c.b16 %v1450, %v1447
    %v1610 = vpack.c.b16 %v1451, %v1448
    %v1611 = vpack.c.b16 %v1455, %v1452
    %v1612 = vpack.c.b16 %v1456, %v1453
    %v1613 = vpack.c.b16 %v1457, %v1454
    %v1614 = vpack.c.b16 %v1461, %v1458
    %v1615 = vpack.c.b16 %v1462, %v1459
    %v1616 = vpack.c.b16 %v1463, %v1460
    %v1617 = vpack.c.b16 %v1467, %v1464
    %v1618 = vpack.c.b16 %v1468, %v1465
    %v1619 = vpack.c.b16 %v1469, %v1466
    %v1620 = vpack.c.b16 %v1473, %v1470
    %v1621 = vpack.c.b16 %v1474, %v1471
    %v1622 = vpack.c.b16 %v1475, %v1472
    %v1623 = vpack.c.b16 %v1479, %v1476
    %v1624 = vpack.c.b16 %v1480, %v1477
    %v1625 = vpack.c.b16 %v1481, %v1478
    %v1626 = vpack.c.b16 %v1485, %v1482
    %v1627 = vpack.c.b16 %v1486, %v1483
    %v1628 = vpack.c.b16 %v1487, %v1484
    %v1629 = vpack.c.b16 %v1491, %v1488
    %v1630 = vpack.c.b16 %v1492, %v1489
    %v1631 = vpack.c.b16 %v1493, %v1490
    %v1632 = vpack.c.b16 %v1497, %v1494
    %v1633 = vpack.c.b16 %v1498, %v1495
    %v1634 = vpack.c.b16 %v1499, %v1496
    %v1635 = vpack.c.b16 %v1503, %v1500
    %v1636 = vpack.c.b16 %v1504, %v1501
    %v1637 = vpack.c.b16 %v1505, %v1502
    %v1638 = vpack.c.b16 %v1509, %v1506
    %v1639 = vpack.c.b16 %v1510, %v1507
    %v1640 = vpack.c.b16 %v1511, %v1508
    %v1641 = vpack.c.b16 %v1515, %v1512
    %v1642 = vpack.c.b16 %v1516, %v1513
    %v1643 = vpack.c.b16 %v1517, %v1514
    %v1644 = vpack.c.b16 %v1521, %v1518
    %v1645 = vpack.c.b16 %v1522, %v1519
    %v1646 = vpack.c.b16 %v1523, %v1520
    %v1647 = vpack.c.b16 %v1527, %v1524
    %v1648 = vpack.c.b16 %v1528, %v1525
    %v1649 = vpack.c.b16 %v1529, %v1526
    %v1650 = vpack.c.b16 %v1533, %v1530
    %v1651 = vpack.c.b16 %v1534, %v1531
    %v1652 = vpack.c.b16 %v1535, %v1532
    %v1653 = vpack.c.b16 %v1539, %v1536
    %v1654 = vpack.c.b16 %v1540, %v1537
    %v1655 = vpack.c.b16 %v1541, %v1538
    %v1656 = vpack.c.b16 %v1545, %v1542
    %v1657 = vpack.c.b16 %v1546, %v1543
    %v1658 = vpack.c.b16 %v1547, %v1544
    %v1659 = vpack.c.b16 %v1551, %v1548
    %v1660 = vpack.c.b16 %v1552, %v1549
    %v1661 = vpack.c.b16 %v1553, %v1550
    %v1662 = vpack.c.b16 %v1557, %v1554
    %v1663 = vpack.c.b16 %v1558, %v1555
    %v1664 = vpack.c.b16 %v1559, %v1556
    %v1665 = vpack.c.b16 %v1563, %v1560
    %v1666 = vpack.c.b16 %v1564, %v1561
    %v1667 = vpack.c.b16 %v1565, %v1562
    %v1668 = vpack.c.b16 %v1569, %v1566
    %v1669 = vpack.c.b16 %v1570, %v1567
    %v1670 = vpack.c.b16 %v1571, %v1568
    %v1671 = vpack.c.b16 %v1575, %v1572
    %v1672 = vpack.c.b16 %v1576, %v1573
    %v1673 = vpack.c.b16 %v1577, %v1574
    %1770 = vmatpush.bf16.msra.mxu0 %v1599
    %1771 = vmatpush.bf16.msra.mxu0 %v1596
    %1772 = vmatpush.bf16.msra.mxu0 %v1593
    %1773 = vmatpush.bf16.msra.mxu0 %v1590
    %1774 = vmatpush.bf16.msra.mxu0 %v1587
    %1775 = vmatpush.bf16.msra.mxu0 %v1584
    %1776 = vmatpush.bf16.msra.mxu0 %v1581
    %1777 = vmatpush.bf16.msra.mxu0 %v1578
    %1778 = vmatmul.bf16.gmra.mxu0 %v311
    %v1779 = vpop.f32.mrf.mxu0
    %v1780 = vadd.f32 %v1252, %v1779
    %v1781 = vpop.f32.mrf.mxu0
    %1782 = vdwg.mxu0
    %1783 = vmatpush.bf16.msra.mxu0 %v1623
    %1784 = vmatpush.bf16.msra.mxu0 %v1620
    %1785 = vmatpush.bf16.msra.mxu0 %v1617
    %1786 = vmatpush.bf16.msra.mxu0 %v1614
    %1787 = vmatpush.bf16.msra.mxu0 %v1611
    %1788 = vmatpush.bf16.msra.mxu0 %v1608
    %1789 = vmatpush.bf16.msra.mxu0 %v1605
    %1790 = vmatpush.bf16.msra.mxu0 %v1602
    %1791 = vmatmul.bf16.gmra.mxu0 %v312
    %v1792 = vpop.f32.mrf.mxu0
    %v1793 = vadd.f32 %v1780, %v1792
    %v1794 = vpop.f32.mrf.mxu0
    %1795 = vdwg.mxu0
    %1796 = vmatpush.bf16.msra.mxu0 %v1647
    %1797 = vmatpush.bf16.msra.mxu0 %v1644
    %1798 = vmatpush.bf16.msra.mxu0 %v1641
    %1799 = vmatpush.bf16.msra.mxu0 %v1638
    %1800 = vmatpush.bf16.msra.mxu0 %v1635
    %1801 = vmatpush.bf16.msra.mxu0 %v1632
    %1802 = vmatpush.bf16.msra.mxu0 %v1629
    %1803 = vmatpush.bf16.msra.mxu0 %v1626
    %1804 = vmatmul.bf16.gmra.mxu0 %v313
    %v1805 = vpop.f32.mrf.mxu0
    %v1806 = vadd.f32 %v1793, %v1805
    %v1807 = vpop.f32.mrf.mxu0
    %1808 = vdwg.mxu0
    %1809 = vmatpush.bf16.msra.mxu0 %v1671
    %1810 = vmatpush.bf16.msra.mxu0 %v1668
    %1811 = vmatpush.bf16.msra.mxu0 %v1665
    %1812 = vmatpush.bf16.msra.mxu0 %v1662
    %1813 = vmatpush.bf16.msra.mxu0 %v1659
    %1814 = vmatpush.bf16.msra.mxu0 %v1656
    %1815 = vmatpush.bf16.msra.mxu0 %v1653
    %1816 = vmatpush.bf16.msra.mxu0 %v1650
    %1817 = vmatmul.bf16.gmra.mxu0 %v314
    %v1818 = vpop.f32.mrf.mxu0
    %v1819 = vadd.f32 %v1806, %v1818
    %v1820 = vpop.f32.mrf.mxu0
    %1821 = vdwg.mxu0
    %1822 = vmatpush.bf16.msra.mxu0 %v1600
    %1823 = vmatpush.bf16.msra.mxu0 %v1597
    %1824 = vmatpush.bf16.msra.mxu0 %v1594
    %1825 = vmatpush.bf16.msra.mxu0 %v1591
    %1826 = vmatpush.bf16.msra.mxu0 %v1588
    %1827 = vmatpush.bf16.msra.mxu0 %v1585
    %1828 = vmatpush.bf16.msra.mxu0 %v1582
    %1829 = vmatpush.bf16.msra.mxu0 %v1579
    %1830 = vmatmul.bf16.gmra.mxu0 %v311
    %v1831 = vpop.f32.mrf.mxu0
    %v1832 = vadd.f32 %v1253, %v1831
    %v1833 = vpop.f32.mrf.mxu0
    %1834 = vdwg.mxu0
    %1835 = vmatpush.bf16.msra.mxu0 %v1624
    %1836 = vmatpush.bf16.msra.mxu0 %v1621
    %1837 = vmatpush.bf16.msra.mxu0 %v1618
    %1838 = vmatpush.bf16.msra.mxu0 %v1615
    %1839 = vmatpush.bf16.msra.mxu0 %v1612
    %1840 = vmatpush.bf16.msra.mxu0 %v1609
    %1841 = vmatpush.bf16.msra.mxu0 %v1606
    %1842 = vmatpush.bf16.msra.mxu0 %v1603
    %1843 = vmatmul.bf16.gmra.mxu0 %v312
    %v1844 = vpop.f32.mrf.mxu0
    %v1845 = vadd.f32 %v1832, %v1844
    %v1846 = vpop.f32.mrf.mxu0
    %1847 = vdwg.mxu0
    %1848 = vmatpush.bf16.msra.mxu0 %v1648
    %1849 = vmatpush.bf16.msra.mxu0 %v1645
    %1850 = vmatpush.bf16.msra.mxu0 %v1642
    %1851 = vmatpush.bf16.msra.mxu0 %v1639
    %1852 = vmatpush.bf16.msra.mxu0 %v1636
    %1853 = vmatpush.bf16.msra.mxu0 %v1633
    %1854 = vmatpush.bf16.msra.mxu0 %v1630
    %1855 = vmatpush.bf16.msra.mxu0 %v1627
    %1856 = vmatmul.bf16.gmra.mxu0 %v313
    %v1857 = vpop.f32.mrf.mxu0
    %v1858 = vadd.f32 %v1845, %v1857
    %v1859 = vpop.f32.mrf.mxu0
    %1860 = vdwg.mxu0
    %1861 = vmatpush.bf16.msra.mxu0 %v1672
    %1862 = vmatpush.bf16.msra.mxu0 %v1669
    %1863 = vmatpush.bf16.msra.mxu0 %v1666
    %1864 = vmatpush.bf16.msra.mxu0 %v1663
    %1865 = vmatpush.bf16.msra.mxu0 %v1660
    %1866 = vmatpush.bf16.msra.mxu0 %v1657
    %1867 = vmatpush.bf16.msra.mxu0 %v1654
    %1868 = vmatpush.bf16.msra.mxu0 %v1651
    %1869 = vmatmul.bf16.gmra.mxu0 %v314
    %v1870 = vpop.f32.mrf.mxu0
    %v1871 = vadd.f32 %v1858, %v1870
    %v1872 = vpop.f32.mrf.mxu0
    %1873 = vdwg.mxu0
    %1874 = vmatpush.bf16.msra.mxu0 %v1601
    %1875 = vmatpush.bf16.msra.mxu0 %v1598
    %1876 = vmatpush.bf16.msra.mxu0 %v1595
    %1877 = vmatpush.bf16.msra.mxu0 %v1592
    %1878 = vmatpush.bf16.msra.mxu0 %v1589
    %1879 = vmatpush.bf16.msra.mxu0 %v1586
    %1880 = vmatpush.bf16.msra.mxu0 %v1583
    %1881 = vmatpush.bf16.msra.mxu0 %v1580
    %1882 = vmatmul.bf16.gmra.mxu0 %v311
    %v1883 = vpop.f32.mrf.mxu0
    %v1884 = vadd.f32 %v1254, %v1883
    %v1885 = vpop.f32.mrf.mxu0
    %1886 = vdwg.mxu0
    %1887 = vmatpush.bf16.msra.mxu0 %v1625
    %1888 = vmatpush.bf16.msra.mxu0 %v1622
    %1889 = vmatpush.bf16.msra.mxu0 %v1619
    %1890 = vmatpush.bf16.msra.mxu0 %v1616
    %1891 = vmatpush.bf16.msra.mxu0 %v1613
    %1892 = vmatpush.bf16.msra.mxu0 %v1610
    %1893 = vmatpush.bf16.msra.mxu0 %v1607
    %1894 = vmatpush.bf16.msra.mxu0 %v1604
    %1895 = vmatmul.bf16.gmra.mxu0 %v312
    %v1896 = vpop.f32.mrf.mxu0
    %v1897 = vadd.f32 %v1884, %v1896
    %v1898 = vpop.f32.mrf.mxu0
    %1899 = vdwg.mxu0
    %1900 = vmatpush.bf16.msra.mxu0 %v1649
    %1901 = vmatpush.bf16.msra.mxu0 %v1646
    %1902 = vmatpush.bf16.msra.mxu0 %v1643
    %1903 = vmatpush.bf16.msra.mxu0 %v1640
    %1904 = vmatpush.bf16.msra.mxu0 %v1637
    %1905 = vmatpush.bf16.msra.mxu0 %v1634
    %1906 = vmatpush.bf16.msra.mxu0 %v1631
    %1907 = vmatpush.bf16.msra.mxu0 %v1628
    %1908 = vmatmul.bf16.gmra.mxu0 %v313
    %v1909 = vpop.f32.mrf.mxu0
    %v1910 = vadd.f32 %v1897, %v1909
    %v1911 = vpop.f32.mrf.mxu0
    %1912 = vdwg.mxu0
    %1913 = vmatpush.bf16.msra.mxu0 %v1673
    %1914 = vmatpush.bf16.msra.mxu0 %v1670
    %1915 = vmatpush.bf16.msra.mxu0 %v1667
    %1916 = vmatpush.bf16.msra.mxu0 %v1664
    %1917 = vmatpush.bf16.msra.mxu0 %v1661
    %1918 = vmatpush.bf16.msra.mxu0 %v1658
    %1919 = vmatpush.bf16.msra.mxu0 %v1655
    %1920 = vmatpush.bf16.msra.mxu0 %v1652
    %1921 = vmatmul.bf16.gmra.mxu0 %v314
    %v1922 = vpop.f32.mrf.mxu0
    %v1923 = vadd.f32 %v1910, %v1922
    %v1924 = vpop.f32.mrf.mxu0
    %1925 = vdwg.mxu0
    %v1926 = vmax.f32 %v1819, 0.0
    %v1927 = vmax.f32 %v1871, 0.0
    %v1928 = vmax.f32 %v1923, 0.0
    %v1929 = vld [vmem:[%s8] sm:$0x7]
    %v1931 = vperm.slane %v1929, 0
    %v1932 = vperm.slane %v1929, 1
    %v1933 = vperm.slane %v1929, 2
    %v1937 = vmul.f32 %v1119, %v1931
    %v1938 = vmul.f32 %v1120, %v1932
    %v1939 = vmul.f32 %v1121, %v1933
    %v1940 = vadd.f32 %v1937, %v1938
    %v1941 = vadd.f32 %v1940, %v1939
    %1942 = vadd.xlane.f32.xlu0 %v1941
    %v1943 = vpop.xlane.xlu0 %1942
    %s1944 = sld [smem:[#allocation8]]
    %v1945 = vstv %s1944
    %v1946 = vadd.f32 %v1943, %v1945
    %v1947 = vld [vmem:[%s9] sm:$0x7]
    %v1949 = vperm.slane %v1947, 0
    %v1950 = vperm.slane %v1947, 1
    %v1951 = vperm.slane %v1947, 2
    %v1955 = vmul.f32 %v1926, %v1949
    %v1956 = vmul.f32 %v1927, %v1950
    %v1957 = vmul.f32 %v1928, %v1951
    %v1958 = vadd.f32 %v1955, %v1956
    %v1959 = vadd.f32 %v1958, %v1957
    %1960 = vadd.xlane.f32.xlu0 %v1959
    %v1961 = vpop.xlane.xlu0 %1960
    %s1962 = sld [smem:[#allocation8 + $0x1]]
    %v1963 = vstv %s1962
    %v1964 = vadd.f32 %v1961, %v1963
    %vm1965 = vcmask 7168
    %v1966 = vsel %vm1965, %v1946, %v1964
    %vm1967 = vcmask 15360
    %1968 = vst.msk [vmem:[%s11] sm:$0xff] %vm1967, %v1966
    // Predicated region
    $region62: #{critic_forward.1} parent=1 // pred_check
      _
    $region63: #{critic_forward.1} parent=1 // pred_check_branch
      %1970 = sbr.rel (0) target = $region65
    $region64: #{critic_forward.1} parent=1 // pred_region
      _
    $region65: #{critic_forward.1} parent=1 // pred_fallthru
      _
    // Predicated region
    $region66: #{critic_forward.1} parent=1 // pred_check
      _
    $region67: #{critic_forward.1} parent=1 // pred_check_branch
      %1972 = sbr.rel (0) target = $region69
    $region68: #{critic_forward.1} parent=1 // pred_region
      _
    $region69: #{critic_forward.1} parent=1 // pred_fallthru
      _
    %1973 = vsyncpa [#allocation3], 1
    %1974 = vsyncpa [#allocation6], 1
    %1975 = vsyncpa [#allocation4], 1

</llo_original>
